<compile_context>
chip_gen: v7x
topology: tpu7x:2x2x1
jax: 0.10.0
libtpu: 0.0.40
codegen_flags: <defaults>
</compile_context>

<pallas_src>
import jax
import jax.numpy as jnp
from jax.experimental import pallas as pl
from jax.experimental.pallas import tpu as pltpu

PARAM_ORDER = ("b0", "w0z", "w0u", "w0zu", "w_sigma", "b1", "w1z", "w1u", "w1zu")

_DEFAULT_TILE_B = 256    # sublane tile target (multiple of 8)
_DEFAULT_TILE_F = 1024   # lane tile target (multiple of 128)


# --------------------------------------------------------------------------
# Combinator: fused Pallas kernel
# --------------------------------------------------------------------------
def _combinator_kernel(z_ref, u_ref, p_ref, g_ref):
    """One (tb, tf) tile of z/u; all 9 params live in a single (9, pb, tf) ref."""
    z = z_ref[...].astype(jnp.float32)
    u = u_ref[...].astype(jnp.float32)
    zu = z * u

    def p(k):
        # (pb, tf) with pb in {1, tb}; broadcasts against (tb, tf) on the VPU.
        return p_ref[k].astype(jnp.float32)

    pre = p(5) + p(6) * z + p(7) * u + p(8) * zu      # b1 + w1z*z + w1u*u + w1zu*zu
    sig = jax.nn.sigmoid(pre)                         # EUP
    g = p(0) + p(1) * z + p(2) * u + p(3) * zu + p(4) * sig
    g_ref[...] = g.astype(g_ref.dtype)


def _pick_tile(dim, align, target):
    """Largest multiple of `align` that divides `dim` and is <= target, else full dim."""
    if dim <= target or dim % align != 0:
        return dim                      # full-extent block is always legal
    best = align
    t = align
    while t <= target:
        if dim % t == 0:
            best = t
        t += align
    return best


def combinator_forward(z, u, params, *, tile_b=None, tile_f=None,
                       vmem_limit_bytes=None):
    """Combinator forward as a Pallas TPU kernel.

    z, u   : (B, F) float arrays (f32 or bf16; math is always f32).
    params : dict with keys PARAM_ORDER; each value is (F,), (1, F) (per-feature,
             broadcast over the batch - recommended) or (B, F) (the literal
             PyTorch parameter shape).
    """
    z = jnp.asarray(z)
    u = jnp.asarray(u)
    assert z.ndim == 2 and z.shape == u.shape
    B, F = z.shape

    # Normalize + pack the 9 parameters into a single (9, Pb, F) stream.
    plist = []
    for name in PARAM_ORDER:
        p = jnp.asarray(params[name])
        if p.ndim == 1:
            p = p[None, :]
        assert p.shape[1] == F and p.shape[0] in (1, B), (name, p.shape)
        plist.append(p)
    leads = {int(p.shape[0]) for p in plist}
    if leads == {1}:
        Pb = 1
    else:
        Pb = B
        plist = [jnp.broadcast_to(p, (B, F)) for p in plist]
    packed = jnp.stack(plist, axis=0)                 # (9, Pb, F)

    # Tile selection: sublane multiple of 8, lane multiple of 128, or full dim.
    tb = tile_b if tile_b is not None else _pick_tile(B, 8, _DEFAULT_TILE_B)
    tf = tile_f if tile_f is not None else _pick_tile(F, 128, _DEFAULT_TILE_F)
    assert B % tb == 0 and F % tf == 0, "tiles must divide (B, F)"
    assert tb == B or tb % 8 == 0, "tile_b must be a multiple of 8 or the full batch dim"
    assert tf == F or tf % 128 == 0, "tile_f must be a multiple of 128 or the full feature dim"

    grid = (B // tb, F // tf)
    zu_spec = pl.BlockSpec((tb, tf), lambda i, j: (i, j))
    if Pb == 1:
        p_spec = pl.BlockSpec((9, 1, tf), lambda i, j: (0, 0, j))
    else:
        p_spec = pl.BlockSpec((9, tb, tf), lambda i, j: (0, i, j))

    cp = dict(dimension_semantics=("parallel", "parallel"))
    if vmem_limit_bytes is not None:
        cp["vmem_limit_bytes"] = int(vmem_limit_bytes)

    return pl.pallas_call(
        _combinator_kernel,
        out_shape=jax.ShapeDtypeStruct((B, F), z.dtype),
        grid_spec=pltpu.PrefetchScalarGridSpec(
            num_scalar_prefetch=0,
            grid=grid,
            in_specs=[zu_spec, zu_spec, p_spec],
            out_specs=zu_spec,
        ),
        compiler_params=pltpu.CompilerParams(**cp),
    )(z, u, packed)


def combinator_reference(z, u, params):
    """Pure-jnp reference with identical semantics (verification only)."""
    z = jnp.asarray(z)
    u = jnp.asarray(u)
    p = {k: jnp.asarray(v) for k, v in params.items()}
    zu = z * u
    pre = p["b1"] + p["w1z"] * z + p["w1u"] * u + p["w1zu"] * zu
    return (p["b0"] + p["w0z"] * z + p["w0u"] * u + p["w0zu"] * zu
            + p["w_sigma"] * jax.nn.sigmoid(pre))


def init_combinator_params(in_features, leading=1, dtype=jnp.float32):
    """Matches Combinator.__init__ (zeros / ones).

    leading=1 gives per-feature parameters (broadcast over the batch inside the
    kernel - numerically identical to the PyTorch batch-constant init, ~4x less
    HBM traffic); leading=batch reproduces the literal (batch, F) shape.
    """
    zeros = jnp.zeros((leading, in_features), dtype)
    ones = jnp.ones((leading, in_features), dtype)
    return {"b0": zeros, "w0z": ones, "w0u": zeros, "w0zu": zeros,
            "w_sigma": ones, "b1": zeros, "w1z": ones, "w1u": zeros, "w1zu": zeros}


# --------------------------------------------------------------------------
# LadderNetwork forward (plain jnp glue around the Pallas combinator)
# --------------------------------------------------------------------------
def _batch_norm(x, eps=1e-5):
    # nn.BatchNorm1d(affine=False) in training mode: biased batch variance.
    mean = jnp.mean(x, axis=0, keepdims=True)
    var = jnp.var(x, axis=0, keepdims=True)
    return (x - mean) / jnp.sqrt(var + eps)
# TODO(synk): BatchNorm1d running-stat buffer updates (training-time state) are not modeled; they do not affect the forward output.


def init_ladder_params(key, in_features, n_hidden, n_classes, dtype=jnp.float32):
    dims = [in_features, *n_hidden, n_classes]
    L = len(dims) - 1
    keys = jax.random.split(key, 4 * L)
    enc_w, dec_w, gammas, betas = [], [], [], []
    kidx = 0
    for i in range(L):
        enc_w.append(jax.random.normal(keys[kidx], (dims[i + 1], dims[i]), dtype)
                     / (dims[i] ** 0.5)); kidx += 1
        dec_w.append(jax.random.normal(keys[kidx], (dims[i], dims[i + 1]), dtype)
                     / (dims[i + 1] ** 0.5)); kidx += 1
        gammas.append(jax.random.normal(keys[kidx], (dims[i + 1],), dtype)); kidx += 1
        betas.append(jax.random.normal(keys[kidx], (dims[i + 1],), dtype)); kidx += 1
    comb = [init_combinator_params(dims[i]) for i in range(L + 1)]
    return {"dims": dims, "enc_w": enc_w, "dec_w": dec_w,
            "gamma": gammas, "beta": betas, "comb": comb}


def ladder_forward(params, x, noise_key, std=0.2, combinator_fn=combinator_forward):
    """Mirror of LadderNetwork.forward; combinator_fn is the Pallas kernel."""
    dims = params["dims"]
    L = len(dims) - 1
    x_input = x.reshape(x.shape[0], -1).astype(jnp.float32)   # .view(-1, 28*28)
    keys = jax.random.split(noise_key, L + 1)

    # --- noisy ("tilde") encoder path ---
    z_tildes = []
    h = x_input + std * jax.random.normal(keys[0], x_input.shape, jnp.float32)
    z_tildes.append(h)
    for i in range(L):
        z_pre = h @ params["enc_w"][i].T
        zt = _batch_norm(z_pre)
        zt = zt + std * jax.random.normal(keys[i + 1], zt.shape, jnp.float32)
        z_tildes.append(zt)
        h = jax.nn.relu(params["gamma"][i] * (zt + params["beta"][i]))
    y_pred = jax.nn.log_softmax(h, axis=1)        # F.log_softmax (dim=1 on 2-D)
    z_tildes.append(y_pred)                       # parity with the PyTorch code

    # --- clean encoder path (batch mu / sigma for z_hat normalization) ---
    zs_clean = [x_input]
    mus = [jnp.mean(x_input)]
    sigmas = [jnp.std(x_input, ddof=1)]           # torch.std default: unbiased
    h = x_input
    for i in range(L):
        z_pre = h @ params["enc_w"][i].T
        mus.append(jnp.mean(z_pre, axis=0))
        sigmas.append(jnp.std(z_pre, axis=0, ddof=1))
        zc = _batch_norm(z_pre)
        zs_clean.append(zc)
        h = jax.nn.relu(params["gamma"][i] * (zc + params["beta"][i]))

    # --- decoder path: Pallas Combinator at every level ---
    z_hats = [None] * (L + 1)
    for i in range(L, -1, -1):
        if i == L:
            u = _batch_norm(y_pred)
        else:
            u = _batch_norm(z_hats[i + 1] @ params["dec_w"][i].T)
        z_hat = combinator_fn(z_tildes[i], u, params["comb"][i])
        z_hats[i] = (z_hat - mus[i]) / sigmas[i]

    y_out = jnp.concatenate(
        [y_pred, jnp.full((y_pred.shape[0], 1), -999999999.0, y_pred.dtype)], axis=1)
    return zs_clean, z_hats, y_out


# --------------------------------------------------------------------------
# Demo / verification
# --------------------------------------------------------------------------
if __name__ == "__main__":
    key = jax.random.PRNGKey(0)
    k_comb, k_big, k_net, k_x, k_noise = jax.random.split(key, 5)

    # 1) Combinator kernel vs reference, spec-exact (B, F) parameters.
    B, F = 128, 512
    kz, ku, *kp = jax.random.split(k_comb, 11)
    z = jax.random.normal(kz, (B, F), jnp.float32)
    u = jax.random.normal(ku, (B, F), jnp.float32)
    params_bf = {name: 0.5 * jax.random.normal(kp[i], (B, F), jnp.float32)
                 for i, name in enumerate(PARAM_ORDER)}
    g = combinator_forward(z, u, params_bf)
    jax.block_until_ready(g)
    assert jnp.allclose(g, combinator_reference(z, u, params_bf),
                        atol=1e-4, rtol=1e-4), "Combinator (B,F) params mismatch"

    # 2) Tiled run (grid 2x2, tiles 256x1024) with per-feature (1, F) parameters.
    B2, F2 = 512, 2048
    kz2, ku2, *kp2 = jax.random.split(k_big, 11)
    z2 = jax.random.normal(kz2, (B2, F2), jnp.float32)
    u2 = jax.random.normal(ku2, (B2, F2), jnp.float32)
    params_pf = {name: 0.5 * jax.random.normal(kp2[i], (1, F2), jnp.float32)
                 for i, name in enumerate(PARAM_ORDER)}
    g2 = combinator_forward(z2, u2, params_pf)
    jax.block_until_ready(g2)
    assert jnp.allclose(g2, combinator_reference(z2, u2, params_pf),
                        atol=1e-4, rtol=1e-4), "tiled Combinator mismatch"

    # 3) bf16 storage, f32 math inside the kernel.
    z_bf = z2.astype(jnp.bfloat16)
    u_bf = u2.astype(jnp.bfloat16)
    g_bf = combinator_forward(z_bf, u_bf, params_pf)
    jax.block_until_ready(g_bf)
    ref_bf = combinator_reference(z_bf.astype(jnp.float32),
                                  u_bf.astype(jnp.float32), params_pf)
    assert jnp.allclose(g_bf.astype(jnp.float32), ref_bf,
                        atol=0.08, rtol=0.05), "bf16 Combinator mismatch"

    # 4) Full LadderNetwork forward, Pallas combinator vs pure-jnp combinator.
    batch = 100                               # module-level batch_size in the spec
    in_features, n_hidden, n_classes = 28 * 28, [128, 64], 10
    net = init_ladder_params(k_net, in_features, n_hidden, n_classes)
    x = jax.random.normal(k_x, (batch, 28, 28), jnp.float32)

    zs_clean, z_hats, y_pred = ladder_forward(net, x, k_noise,
                                              combinator_fn=combinator_forward)
    jax.block_until_ready((zs_clean, z_hats, y_pred))
    _, z_hats_ref, y_pred_ref = ladder_forward(net, x, k_noise,
                                               combinator_fn=combinator_reference)
    for zh, zr in zip(z_hats, z_hats_ref):
        assert jnp.allclose(zh, zr, atol=1e-4, rtol=1e-4), "ladder z_hat mismatch"
    assert jnp.allclose(y_pred, y_pred_ref), "ladder y_pred mismatch"
    assert y_pred.shape == (batch, n_classes + 1)

    print("KERNEL_OK")
</pallas_src>

<mosaic_0001>
module attributes {stable_mosaic.version = 11 : i64} {
  func.func @_combinator_kernel(%arg0: i32, %arg1: i32, %arg2: memref<128x512xf32, #tpu.memory_space<vmem>>, %arg3: memref<128x512xf32, #tpu.memory_space<vmem>>, %arg4: memref<9x128x512xf32, #tpu.memory_space<vmem>>, %arg5: memref<128x512xf32, #tpu.memory_space<vmem>>) attributes {dimension_semantics = [#tpu.dimension_semantics<parallel>, #tpu.dimension_semantics<parallel>], iteration_bounds = array<i64: 1, 1>, scalar_prefetch = 0 : i64, scratch_operands = 0 : i64, tpu.core_type = #tpu.core_type<tc>, window_params = [{transform_indices = @transform_0, window_bounds = array<i64: 128, 512>}, {transform_indices = @transform_1, window_bounds = array<i64: 128, 512>}, {transform_indices = @transform_2, window_bounds = array<i64: 9, 128, 512>}, {transform_indices = @transform_3, window_bounds = array<i64: 128, 512>}]} {
    %c0 = arith.constant 0 : index
    %c0_0 = arith.constant 0 : index
    %0 = vector.load %arg2[%c0, %c0_0] : memref<128x512xf32, #tpu.memory_space<vmem>>, vector<128x512xf32>
    %c0_1 = arith.constant 0 : index
    %c0_2 = arith.constant 0 : index
    %1 = vector.load %arg3[%c0_1, %c0_2] : memref<128x512xf32, #tpu.memory_space<vmem>>, vector<128x512xf32>
    %2 = arith.mulf %0, %1 : vector<128x512xf32>
    %c5 = arith.constant 5 : index
    %c0_3 = arith.constant 0 : index
    %c0_4 = arith.constant 0 : index
    %3 = vector.load %arg4[%c5, %c0_3, %c0_4] : memref<9x128x512xf32, #tpu.memory_space<vmem>>, vector<1x128x512xf32>
    %4 = vector.shape_cast %3 : vector<1x128x512xf32> to vector<128x512xf32>
    %c6 = arith.constant 6 : index
    %c0_5 = arith.constant 0 : index
    %c0_6 = arith.constant 0 : index
    %5 = vector.load %arg4[%c6, %c0_5, %c0_6] : memref<9x128x512xf32, #tpu.memory_space<vmem>>, vector<1x128x512xf32>
    %6 = vector.shape_cast %5 : vector<1x128x512xf32> to vector<128x512xf32>
    %7 = arith.mulf %6, %0 : vector<128x512xf32>
    %8 = arith.addf %4, %7 : vector<128x512xf32>
    %c7 = arith.constant 7 : index
    %c0_7 = arith.constant 0 : index
    %c0_8 = arith.constant 0 : index
    %9 = vector.load %arg4[%c7, %c0_7, %c0_8] : memref<9x128x512xf32, #tpu.memory_space<vmem>>, vector<1x128x512xf32>
    %10 = vector.shape_cast %9 : vector<1x128x512xf32> to vector<128x512xf32>
    %11 = arith.mulf %10, %1 : vector<128x512xf32>
    %12 = arith.addf %8, %11 : vector<128x512xf32>
    %c8 = arith.constant 8 : index
    %c0_9 = arith.constant 0 : index
    %c0_10 = arith.constant 0 : index
    %13 = vector.load %arg4[%c8, %c0_9, %c0_10] : memref<9x128x512xf32, #tpu.memory_space<vmem>>, vector<1x128x512xf32>
    %14 = vector.shape_cast %13 : vector<1x128x512xf32> to vector<128x512xf32>
    %15 = arith.mulf %14, %2 : vector<128x512xf32>
    %16 = arith.addf %12, %15 : vector<128x512xf32>
    %17 = arith.negf %16 : vector<128x512xf32>
    %18 = math.exp %17 : vector<128x512xf32>
    %cst = arith.constant 1.000000e+00 : f32
    %19 = vector.broadcast %cst : f32 to vector<128x512xf32>
    %20 = arith.addf %19, %18 : vector<128x512xf32>
    %21 = arith.divf %19, %20 : vector<128x512xf32>
    %c0_11 = arith.constant 0 : index
    %c0_12 = arith.constant 0 : index
    %c0_13 = arith.constant 0 : index
    %22 = vector.load %arg4[%c0_11, %c0_12, %c0_13] : memref<9x128x512xf32, #tpu.memory_space<vmem>>, vector<1x128x512xf32>
    %23 = vector.shape_cast %22 : vector<1x128x512xf32> to vector<128x512xf32>
    %c1 = arith.constant 1 : index
    %c0_14 = arith.constant 0 : index
    %c0_15 = arith.constant 0 : index
    %24 = vector.load %arg4[%c1, %c0_14, %c0_15] : memref<9x128x512xf32, #tpu.memory_space<vmem>>, vector<1x128x512xf32>
    %25 = vector.shape_cast %24 : vector<1x128x512xf32> to vector<128x512xf32>
    %26 = arith.mulf %25, %0 : vector<128x512xf32>
    %27 = arith.addf %23, %26 : vector<128x512xf32>
    %c2 = arith.constant 2 : index
    %c0_16 = arith.constant 0 : index
    %c0_17 = arith.constant 0 : index
    %28 = vector.load %arg4[%c2, %c0_16, %c0_17] : memref<9x128x512xf32, #tpu.memory_space<vmem>>, vector<1x128x512xf32>
    %29 = vector.shape_cast %28 : vector<1x128x512xf32> to vector<128x512xf32>
    %30 = arith.mulf %29, %1 : vector<128x512xf32>
    %31 = arith.addf %27, %30 : vector<128x512xf32>
    %c3 = arith.constant 3 : index
    %c0_18 = arith.constant 0 : index
    %c0_19 = arith.constant 0 : index
    %32 = vector.load %arg4[%c3, %c0_18, %c0_19] : memref<9x128x512xf32, #tpu.memory_space<vmem>>, vector<1x128x512xf32>
    %33 = vector.shape_cast %32 : vector<1x128x512xf32> to vector<128x512xf32>
    %34 = arith.mulf %33, %2 : vector<128x512xf32>
    %35 = arith.addf %31, %34 : vector<128x512xf32>
    %c4 = arith.constant 4 : index
    %c0_20 = arith.constant 0 : index
    %c0_21 = arith.constant 0 : index
    %36 = vector.load %arg4[%c4, %c0_20, %c0_21] : memref<9x128x512xf32, #tpu.memory_space<vmem>>, vector<1x128x512xf32>
    %37 = vector.shape_cast %36 : vector<1x128x512xf32> to vector<128x512xf32>
    %38 = arith.mulf %37, %21 : vector<128x512xf32>
    %39 = arith.addf %35, %38 : vector<128x512xf32>
    %c0_22 = arith.constant 0 : index
    %c0_23 = arith.constant 0 : index
    %40 = vector.load %arg5[%c0_22, %c0_23] : memref<128x512xf32, #tpu.memory_space<vmem>>, vector<128x512xf32>
    tpu.vector_store %arg5[%c0_22, %c0_23], %39 {strides = array<i32>} : memref<128x512xf32, #tpu.memory_space<vmem>>, vector<128x512xf32>,
    return
  }
  func.func @transform_0(%arg0: i32, %arg1: i32) -> (i32, i32) {
    %c0_i32 = arith.constant 0 : i32
    return %arg0, %arg1 : i32, i32
  }
  func.func @transform_1(%arg0: i32, %arg1: i32) -> (i32, i32) {
    %c0_i32 = arith.constant 0 : i32
    return %arg0, %arg1 : i32, i32
  }
  func.func @transform_2(%arg0: i32, %arg1: i32) -> (i32, i32, i32) {
    %c0_i32 = arith.constant 0 : i32
    %c0_i32_0 = arith.constant 0 : i32
    return %c0_i32, %arg0, %arg1 : i32, i32, i32
  }
  func.func @transform_3(%arg0: i32, %arg1: i32) -> (i32, i32) {
    %c0_i32 = arith.constant 0 : i32
    return %arg0, %arg1 : i32, i32
  }
}

</mosaic_0001>

<llo_original>
// kernel: tpu_custom_call.1
$region0: #{tpu_custom_call.1}
  #allocation0 [shape = 'u32[]', space=smem, size = 0x4, offset = 0x4, fixed_abs, tag = 'smem constant byte address 0x4 - core index']
  #allocation1 [shape = 'u32[144,128]{1,0:T(1,128)}', space=vmem, size = 0x12000, scoped, tag = 'internal scratch']
  %s0 = inlined_call_operand.hbm [shape: f32[128,512], index: 0, kind: input, shape index: {}]
  %s1 = inlined_call_operand.hbm [shape: f32[128,512], index: 1, kind: input, shape index: {}]
  %s2 = inlined_call_operand.hbm [shape: f32[9,128,512], index: 2, kind: input, shape index: {}]
  %s3 = inlined_call_operand.hbm [shape: f32[128,512], index: 3, kind: output, shape index: {}]
  %s4 = sld [smem:[#allocation0]]
  $region34: #{tpu_custom_call.1} parent=0
    _
  %s6 = ssub.s32 1, %s4
  %s7 = scalar_select 0, %s6, %s4
  $region1: #{tpu_custom_call.1} parent=0
    #allocation2 [shape = 'u8[262144]{0}', space=vmem, size = 0x40000, scoped, tag = 'input window, operand 0, single buffered']
    #allocation3 [shape = 's32[1]{0}', space=sflag, size = 0x4, scoped, tag = 'scoped memory for tpu_custom_call.1']
    #allocation4 [shape = 's32[1]{0}', space=sflag, size = 0x4, scoped, tag = 'scoped memory for tpu_custom_call.1']
    #allocation5 [shape = 'u8[262144]{0}', space=vmem, size = 0x40000, scoped, tag = 'input window, operand 1, single buffered']
    #allocation6 [shape = 's32[1]{0}', space=sflag, size = 0x4, scoped, tag = 'scoped memory for tpu_custom_call.1']
    #allocation7 [shape = 'u8[2359296]{0}', space=vmem, size = 0x240000, scoped, tag = 'input window, operand 2, single buffered']
    #allocation8 [shape = 'u8[262144]{0}', space=vmem, size = 0x40000, scoped, tag = 'output window, operand 0, single buffered']
    %8 = vsyncpa [#allocation3], 0
    %9 = vsyncpa [#allocation6], 0
    %10 = vsyncpa [#allocation4], 0
    // Predicated region
    $region2: #{tpu_custom_call.1} parent=1 // pred_check
      _
    $region3: #{tpu_custom_call.1} parent=1 // pred_check_branch
      %12 = sbr.rel (0) target = $region5
    $region4: #{tpu_custom_call.1} parent=1 // pred_region
      %s14 = ssub.s32 8192, 8192
      %15 = vsyncadd [#allocation3], %s14
      %s16 = sshll.u32 [#allocation2], 4
      %s17 = int_to_ptr.vmem [resolvable:$true] %s16
      %22 = dma.hbm_to_vmem [thread:$0]  %s0, 8192, %s17, [#allocation3], 512, 512, 32
    $region5: #{tpu_custom_call.1} parent=1 // pred_fallthru
      _
    // Predicated region
    $region6: #{tpu_custom_call.1} parent=1 // pred_check
      _
    $region7: #{tpu_custom_call.1} parent=1 // pred_check_branch
      %24 = sbr.rel (0) target = $region9
    $region8: #{tpu_custom_call.1} parent=1 // pred_region
      %s26 = ssub.s32 8192, 8192
      %27 = vsyncadd [#allocation6], %s26
      %s28 = sshll.u32 [#allocation5], 4
      %s29 = int_to_ptr.vmem [resolvable:$true] %s28
      %34 = dma.hbm_to_vmem [thread:$0]  %s1, 8192, %s29, [#allocation6], 512, 512, 32
    $region9: #{tpu_custom_call.1} parent=1 // pred_fallthru
      _
    // Predicated region
    $region10: #{tpu_custom_call.1} parent=1 // pred_check
      _
    $region11: #{tpu_custom_call.1} parent=1 // pred_check_branch
      %36 = sbr.rel (0) target = $region13
    $region12: #{tpu_custom_call.1} parent=1 // pred_region
      %s38 = ssub.s32 73728, 73728
      %39 = vsyncadd [#allocation6], %s38
      %s40 = sshll.u32 [#allocation7], 4
      %s41 = int_to_ptr.vmem [resolvable:$true] %s40
      %46 = dma.hbm_to_vmem [thread:$0]  %s2, 73728, %s41, [#allocation6], 512, 512, 32
    $region13: #{tpu_custom_call.1} parent=1 // pred_fallthru
      _
    // Predicated region
    $region14: #{tpu_custom_call.1} parent=1 // pred_check
      _
    $region15: #{tpu_custom_call.1} parent=1 // pred_check_branch
      %48 = sbr.rel (0) target = $region17
    $region16: #{tpu_custom_call.1} parent=1 // pred_region
      %49 = dma.done [#allocation3], 8192
    $region17: #{tpu_custom_call.1} parent=1 // pred_fallthru
      _
    // Predicated region
    $region18: #{tpu_custom_call.1} parent=1 // pred_check
      _
    $region19: #{tpu_custom_call.1} parent=1 // pred_check_branch
      %51 = sbr.rel (0) target = $region21
    $region20: #{tpu_custom_call.1} parent=1 // pred_region
      %52 = dma.done [#allocation6], 8192
    $region21: #{tpu_custom_call.1} parent=1 // pred_fallthru
      _
    // Predicated region
    $region22: #{tpu_custom_call.1} parent=1 // pred_check
      _
    $region23: #{tpu_custom_call.1} parent=1 // pred_check_branch
      %54 = sbr.rel (0) target = $region25
    $region24: #{tpu_custom_call.1} parent=1 // pred_region
      %55 = dma.done [#allocation6], 73728
    $region25: #{tpu_custom_call.1} parent=1 // pred_fallthru
      _
    %v56 = vld [vmem:[#allocation2] sm:$0xff]
    %v57 = vld [vmem:[#allocation2 + $0x8] sm:$0xff]
    %v58 = vld [vmem:[#allocation2 + $0x10] sm:$0xff]
    %v59 = vld [vmem:[#allocation2 + $0x18] sm:$0xff]
    %v60 = vld [vmem:[#allocation2 + $0x20] sm:$0xff]
    %v61 = vld [vmem:[#allocation2 + $0x28] sm:$0xff]
    %v62 = vld [vmem:[#allocation2 + $0x30] sm:$0xff]
    %v63 = vld [vmem:[#allocation2 + $0x38] sm:$0xff]
    %v64 = vld [vmem:[#allocation2 + $0x40] sm:$0xff]
    %v65 = vld [vmem:[#allocation2 + $0x48] sm:$0xff]
    %v66 = vld [vmem:[#allocation2 + $0x50] sm:$0xff]
    %v67 = vld [vmem:[#allocation2 + $0x58] sm:$0xff]
    %v68 = vld [vmem:[#allocation2 + $0x60] sm:$0xff]
    %v69 = vld [vmem:[#allocation2 + $0x68] sm:$0xff]
    %v70 = vld [vmem:[#allocation2 + $0x70] sm:$0xff]
    %v71 = vld [vmem:[#allocation2 + $0x78] sm:$0xff]
    %v72 = vld [vmem:[#allocation2 + $0x80] sm:$0xff]
    %v73 = vld [vmem:[#allocation2 + $0x88] sm:$0xff]
    %v74 = vld [vmem:[#allocation2 + $0x90] sm:$0xff]
    %v75 = vld [vmem:[#allocation2 + $0x98] sm:$0xff]
    %v76 = vld [vmem:[#allocation2 + $0xa0] sm:$0xff]
    %v77 = vld [vmem:[#allocation2 + $0xa8] sm:$0xff]
    %v78 = vld [vmem:[#allocation2 + $0xb0] sm:$0xff]
    %v79 = vld [vmem:[#allocation2 + $0xb8] sm:$0xff]
    %v80 = vld [vmem:[#allocation2 + $0xc0] sm:$0xff]
    %v81 = vld [vmem:[#allocation2 + $0xc8] sm:$0xff]
    %v82 = vld [vmem:[#allocation2 + $0xd0] sm:$0xff]
    %v83 = vld [vmem:[#allocation2 + $0xd8] sm:$0xff]
    %v84 = vld [vmem:[#allocation2 + $0xe0] sm:$0xff]
    %v85 = vld [vmem:[#allocation2 + $0xe8] sm:$0xff]
    %v86 = vld [vmem:[#allocation2 + $0xf0] sm:$0xff]
    %v87 = vld [vmem:[#allocation2 + $0xf8] sm:$0xff]
    %v88 = vld [vmem:[#allocation2 + $0x100] sm:$0xff]
    %v89 = vld [vmem:[#allocation2 + $0x108] sm:$0xff]
    %v90 = vld [vmem:[#allocation2 + $0x110] sm:$0xff]
    %v91 = vld [vmem:[#allocation2 + $0x118] sm:$0xff]
    %v92 = vld [vmem:[#allocation2 + $0x120] sm:$0xff]
    %v93 = vld [vmem:[#allocation2 + $0x128] sm:$0xff]
    %v94 = vld [vmem:[#allocation2 + $0x130] sm:$0xff]
    %v95 = vld [vmem:[#allocation2 + $0x138] sm:$0xff]
    %v96 = vld [vmem:[#allocation2 + $0x140] sm:$0xff]
    %v97 = vld [vmem:[#allocation2 + $0x148] sm:$0xff]
    %v98 = vld [vmem:[#allocation2 + $0x150] sm:$0xff]
    %v99 = vld [vmem:[#allocation2 + $0x158] sm:$0xff]
    %v100 = vld [vmem:[#allocation2 + $0x160] sm:$0xff]
    %v101 = vld [vmem:[#allocation2 + $0x168] sm:$0xff]
    %v102 = vld [vmem:[#allocation2 + $0x170] sm:$0xff]
    %v103 = vld [vmem:[#allocation2 + $0x178] sm:$0xff]
    %v104 = vld [vmem:[#allocation2 + $0x180] sm:$0xff]
    %v105 = vld [vmem:[#allocation2 + $0x188] sm:$0xff]
    %v106 = vld [vmem:[#allocation2 + $0x190] sm:$0xff]
    %v107 = vld [vmem:[#allocation2 + $0x198] sm:$0xff]
    %v108 = vld [vmem:[#allocation2 + $0x1a0] sm:$0xff]
    %v109 = vld [vmem:[#allocation2 + $0x1a8] sm:$0xff]
    %v110 = vld [vmem:[#allocation2 + $0x1b0] sm:$0xff]
    %v111 = vld [vmem:[#allocation2 + $0x1b8] sm:$0xff]
    %v112 = vld [vmem:[#allocation2 + $0x1c0] sm:$0xff]
    %v113 = vld [vmem:[#allocation2 + $0x1c8] sm:$0xff]
    %v114 = vld [vmem:[#allocation2 + $0x1d0] sm:$0xff]
    %v115 = vld [vmem:[#allocation2 + $0x1d8] sm:$0xff]
    %v116 = vld [vmem:[#allocation2 + $0x1e0] sm:$0xff]
    %v117 = vld [vmem:[#allocation2 + $0x1e8] sm:$0xff]
    %v118 = vld [vmem:[#allocation2 + $0x1f0] sm:$0xff]
    %v119 = vld [vmem:[#allocation2 + $0x1f8] sm:$0xff]
    %v120 = vld [vmem:[#allocation5] sm:$0xff]
    %v121 = vld [vmem:[#allocation5 + $0x8] sm:$0xff]
    %v122 = vld [vmem:[#allocation5 + $0x10] sm:$0xff]
    %v123 = vld [vmem:[#allocation5 + $0x18] sm:$0xff]
    %v124 = vld [vmem:[#allocation5 + $0x20] sm:$0xff]
    %v125 = vld [vmem:[#allocation5 + $0x28] sm:$0xff]
    %v126 = vld [vmem:[#allocation5 + $0x30] sm:$0xff]
    %v127 = vld [vmem:[#allocation5 + $0x38] sm:$0xff]
    %v128 = vld [vmem:[#allocation5 + $0x40] sm:$0xff]
    %v129 = vld [vmem:[#allocation5 + $0x48] sm:$0xff]
    %v130 = vld [vmem:[#allocation5 + $0x50] sm:$0xff]
    %v131 = vld [vmem:[#allocation5 + $0x58] sm:$0xff]
    %v132 = vld [vmem:[#allocation5 + $0x60] sm:$0xff]
    %v133 = vld [vmem:[#allocation5 + $0x68] sm:$0xff]
    %v134 = vld [vmem:[#allocation5 + $0x70] sm:$0xff]
    %v135 = vld [vmem:[#allocation5 + $0x78] sm:$0xff]
    %v136 = vld [vmem:[#allocation5 + $0x80] sm:$0xff]
    %v137 = vld [vmem:[#allocation5 + $0x88] sm:$0xff]
    %v138 = vld [vmem:[#allocation5 + $0x90] sm:$0xff]
    %v139 = vld [vmem:[#allocation5 + $0x98] sm:$0xff]
    %v140 = vld [vmem:[#allocation5 + $0xa0] sm:$0xff]
    %v141 = vld [vmem:[#allocation5 + $0xa8] sm:$0xff]
    %v142 = vld [vmem:[#allocation5 + $0xb0] sm:$0xff]
    %v143 = vld [vmem:[#allocation5 + $0xb8] sm:$0xff]
    %v144 = vld [vmem:[#allocation5 + $0xc0] sm:$0xff]
    %v145 = vld [vmem:[#allocation5 + $0xc8] sm:$0xff]
    %v146 = vld [vmem:[#allocation5 + $0xd0] sm:$0xff]
    %v147 = vld [vmem:[#allocation5 + $0xd8] sm:$0xff]
    %v148 = vld [vmem:[#allocation5 + $0xe0] sm:$0xff]
    %v149 = vld [vmem:[#allocation5 + $0xe8] sm:$0xff]
    %v150 = vld [vmem:[#allocation5 + $0xf0] sm:$0xff]
    %v151 = vld [vmem:[#allocation5 + $0xf8] sm:$0xff]
    %v152 = vld [vmem:[#allocation5 + $0x100] sm:$0xff]
    %v153 = vld [vmem:[#allocation5 + $0x108] sm:$0xff]
    %v154 = vld [vmem:[#allocation5 + $0x110] sm:$0xff]
    %v155 = vld [vmem:[#allocation5 + $0x118] sm:$0xff]
    %v156 = vld [vmem:[#allocation5 + $0x120] sm:$0xff]
    %v157 = vld [vmem:[#allocation5 + $0x128] sm:$0xff]
    %v158 = vld [vmem:[#allocation5 + $0x130] sm:$0xff]
    %v159 = vld [vmem:[#allocation5 + $0x138] sm:$0xff]
    %v160 = vld [vmem:[#allocation5 + $0x140] sm:$0xff]
    %v161 = vld [vmem:[#allocation5 + $0x148] sm:$0xff]
    %v162 = vld [vmem:[#allocation5 + $0x150] sm:$0xff]
    %v163 = vld [vmem:[#allocation5 + $0x158] sm:$0xff]
    %v164 = vld [vmem:[#allocation5 + $0x160] sm:$0xff]
    %v165 = vld [vmem:[#allocation5 + $0x168] sm:$0xff]
    %v166 = vld [vmem:[#allocation5 + $0x170] sm:$0xff]
    %v167 = vld [vmem:[#allocation5 + $0x178] sm:$0xff]
    %v168 = vld [vmem:[#allocation5 + $0x180] sm:$0xff]
    %v169 = vld [vmem:[#allocation5 + $0x188] sm:$0xff]
    %v170 = vld [vmem:[#allocation5 + $0x190] sm:$0xff]
    %v171 = vld [vmem:[#allocation5 + $0x198] sm:$0xff]
    %v172 = vld [vmem:[#allocation5 + $0x1a0] sm:$0xff]
    %v173 = vld [vmem:[#allocation5 + $0x1a8] sm:$0xff]
    %v174 = vld [vmem:[#allocation5 + $0x1b0] sm:$0xff]
    %v175 = vld [vmem:[#allocation5 + $0x1b8] sm:$0xff]
    %v176 = vld [vmem:[#allocation5 + $0x1c0] sm:$0xff]
    %v177 = vld [vmem:[#allocation5 + $0x1c8] sm:$0xff]
    %v178 = vld [vmem:[#allocation5 + $0x1d0] sm:$0xff]
    %v179 = vld [vmem:[#allocation5 + $0x1d8] sm:$0xff]
    %v180 = vld [vmem:[#allocation5 + $0x1e0] sm:$0xff]
    %v181 = vld [vmem:[#allocation5 + $0x1e8] sm:$0xff]
    %v182 = vld [vmem:[#allocation5 + $0x1f0] sm:$0xff]
    %v183 = vld [vmem:[#allocation5 + $0x1f8] sm:$0xff]
    %v184 = vmul.f32 %v56, %v120
    %v185 = vmul.f32 %v57, %v121
    %v186 = vmul.f32 %v58, %v122
    %v187 = vmul.f32 %v59, %v123
    %v188 = vmul.f32 %v60, %v124
    %v189 = vmul.f32 %v61, %v125
    %v190 = vmul.f32 %v62, %v126
    %v191 = vmul.f32 %v63, %v127
    %v192 = vmul.f32 %v64, %v128
    %v193 = vmul.f32 %v65, %v129
    %v194 = vmul.f32 %v66, %v130
    %v195 = vmul.f32 %v67, %v131
    %v196 = vmul.f32 %v68, %v132
    %v197 = vmul.f32 %v69, %v133
    %v198 = vmul.f32 %v70, %v134
    %v199 = vmul.f32 %v71, %v135
    %v200 = vmul.f32 %v72, %v136
    %v201 = vmul.f32 %v73, %v137
    %v202 = vmul.f32 %v74, %v138
    %v203 = vmul.f32 %v75, %v139
    %v204 = vmul.f32 %v76, %v140
    %v205 = vmul.f32 %v77, %v141
    %v206 = vmul.f32 %v78, %v142
    %v207 = vmul.f32 %v79, %v143
    %v208 = vmul.f32 %v80, %v144
    %v209 = vmul.f32 %v81, %v145
    %v210 = vmul.f32 %v82, %v146
    %v211 = vmul.f32 %v83, %v147
    %v212 = vmul.f32 %v84, %v148
    %v213 = vmul.f32 %v85, %v149
    %v214 = vmul.f32 %v86, %v150
    %v215 = vmul.f32 %v87, %v151
    %v216 = vmul.f32 %v88, %v152
    %v217 = vmul.f32 %v89, %v153
    %v218 = vmul.f32 %v90, %v154
    %v219 = vmul.f32 %v91, %v155
    %v220 = vmul.f32 %v92, %v156
    %v221 = vmul.f32 %v93, %v157
    %v222 = vmul.f32 %v94, %v158
    %v223 = vmul.f32 %v95, %v159
    %v224 = vmul.f32 %v96, %v160
    %v225 = vmul.f32 %v97, %v161
    %v226 = vmul.f32 %v98, %v162
    %v227 = vmul.f32 %v99, %v163
    %v228 = vmul.f32 %v100, %v164
    %v229 = vmul.f32 %v101, %v165
    %v230 = vmul.f32 %v102, %v166
    %v231 = vmul.f32 %v103, %v167
    %v232 = vmul.f32 %v104, %v168
    %v233 = vmul.f32 %v105, %v169
    %v234 = vmul.f32 %v106, %v170
    %v235 = vmul.f32 %v107, %v171
    %v236 = vmul.f32 %v108, %v172
    %v237 = vmul.f32 %v109, %v173
    %v238 = vmul.f32 %v110, %v174
    %v239 = vmul.f32 %v111, %v175
    %v240 = vmul.f32 %v112, %v176
    %v241 = vmul.f32 %v113, %v177
    %v242 = vmul.f32 %v114, %v178
    %v243 = vmul.f32 %v115, %v179
    %v244 = vmul.f32 %v116, %v180
    %v245 = vmul.f32 %v117, %v181
    %v246 = vmul.f32 %v118, %v182
    %v247 = vmul.f32 %v119, %v183
    %s248 = scalar_lea.vmem [#allocation7], 2560
    %v249 = vld [vmem:[%s248] sm:$0xff]
    %v250 = vld [vmem:[%s248 + $0x8] sm:$0xff]
    %v251 = vld [vmem:[%s248 + $0x10] sm:$0xff]
    %v252 = vld [vmem:[%s248 + $0x18] sm:$0xff]
    %v253 = vld [vmem:[%s248 + $0x20] sm:$0xff]
    %v254 = vld [vmem:[%s248 + $0x28] sm:$0xff]
    %v255 = vld [vmem:[%s248 + $0x30] sm:$0xff]
    %v256 = vld [vmem:[%s248 + $0x38] sm:$0xff]
    %v257 = vld [vmem:[%s248 + $0x40] sm:$0xff]
    %v258 = vld [vmem:[%s248 + $0x48] sm:$0xff]
    %v259 = vld [vmem:[%s248 + $0x50] sm:$0xff]
    %v260 = vld [vmem:[%s248 + $0x58] sm:$0xff]
    %v261 = vld [vmem:[%s248 + $0x60] sm:$0xff]
    %v262 = vld [vmem:[%s248 + $0x68] sm:$0xff]
    %v263 = vld [vmem:[%s248 + $0x70] sm:$0xff]
    %v264 = vld [vmem:[%s248 + $0x78] sm:$0xff]
    %v265 = vld [vmem:[%s248 + $0x80] sm:$0xff]
    %v266 = vld [vmem:[%s248 + $0x88] sm:$0xff]
    %v267 = vld [vmem:[%s248 + $0x90] sm:$0xff]
    %v268 = vld [vmem:[%s248 + $0x98] sm:$0xff]
    %v269 = vld [vmem:[%s248 + $0xa0] sm:$0xff]
    %v270 = vld [vmem:[%s248 + $0xa8] sm:$0xff]
    %v271 = vld [vmem:[%s248 + $0xb0] sm:$0xff]
    %v272 = vld [vmem:[%s248 + $0xb8] sm:$0xff]
    %v273 = vld [vmem:[%s248 + $0xc0] sm:$0xff]
    %v274 = vld [vmem:[%s248 + $0xc8] sm:$0xff]
    %v275 = vld [vmem:[%s248 + $0xd0] sm:$0xff]
    %v276 = vld [vmem:[%s248 + $0xd8] sm:$0xff]
    %v277 = vld [vmem:[%s248 + $0xe0] sm:$0xff]
    %v278 = vld [vmem:[%s248 + $0xe8] sm:$0xff]
    %v279 = vld [vmem:[%s248 + $0xf0] sm:$0xff]
    %v280 = vld [vmem:[%s248 + $0xf8] sm:$0xff]
    %v281 = vld [vmem:[%s248 + $0x100] sm:$0xff]
    %v282 = vld [vmem:[%s248 + $0x108] sm:$0xff]
    %v283 = vld [vmem:[%s248 + $0x110] sm:$0xff]
    %v284 = vld [vmem:[%s248 + $0x118] sm:$0xff]
    %v285 = vld [vmem:[%s248 + $0x120] sm:$0xff]
    %v286 = vld [vmem:[%s248 + $0x128] sm:$0xff]
    %v287 = vld [vmem:[%s248 + $0x130] sm:$0xff]
    %v288 = vld [vmem:[%s248 + $0x138] sm:$0xff]
    %v289 = vld [vmem:[%s248 + $0x140] sm:$0xff]
    %v290 = vld [vmem:[%s248 + $0x148] sm:$0xff]
    %v291 = vld [vmem:[%s248 + $0x150] sm:$0xff]
    %v292 = vld [vmem:[%s248 + $0x158] sm:$0xff]
    %v293 = vld [vmem:[%s248 + $0x160] sm:$0xff]
    %v294 = vld [vmem:[%s248 + $0x168] sm:$0xff]
    %v295 = vld [vmem:[%s248 + $0x170] sm:$0xff]
    %v296 = vld [vmem:[%s248 + $0x178] sm:$0xff]
    %v297 = vld [vmem:[%s248 + $0x180] sm:$0xff]
    %v298 = vld [vmem:[%s248 + $0x188] sm:$0xff]
    %v299 = vld [vmem:[%s248 + $0x190] sm:$0xff]
    %v300 = vld [vmem:[%s248 + $0x198] sm:$0xff]
    %v301 = vld [vmem:[%s248 + $0x1a0] sm:$0xff]
    %v302 = vld [vmem:[%s248 + $0x1a8] sm:$0xff]
    %v303 = vld [vmem:[%s248 + $0x1b0] sm:$0xff]
    %v304 = vld [vmem:[%s248 + $0x1b8] sm:$0xff]
    %v305 = vld [vmem:[%s248 + $0x1c0] sm:$0xff]
    %v306 = vld [vmem:[%s248 + $0x1c8] sm:$0xff]
    %v307 = vld [vmem:[%s248 + $0x1d0] sm:$0xff]
    %v308 = vld [vmem:[%s248 + $0x1d8] sm:$0xff]
    %v309 = vld [vmem:[%s248 + $0x1e0] sm:$0xff]
    %v310 = vld [vmem:[%s248 + $0x1e8] sm:$0xff]
    %v311 = vld [vmem:[%s248 + $0x1f0] sm:$0xff]
    %v312 = vld [vmem:[%s248 + $0x1f8] sm:$0xff]
    %s313 = scalar_lea.vmem [#allocation7], 3072
    %v314 = vld [vmem:[%s313] sm:$0xff]
    %v315 = vld [vmem:[%s313 + $0x8] sm:$0xff]
    %v316 = vld [vmem:[%s313 + $0x10] sm:$0xff]
    %v317 = vld [vmem:[%s313 + $0x18] sm:$0xff]
    %v318 = vld [vmem:[%s313 + $0x20] sm:$0xff]
    %v319 = vld [vmem:[%s313 + $0x28] sm:$0xff]
    %v320 = vld [vmem:[%s313 + $0x30] sm:$0xff]
    %v321 = vld [vmem:[%s313 + $0x38] sm:$0xff]
    %v322 = vld [vmem:[%s313 + $0x40] sm:$0xff]
    %v323 = vld [vmem:[%s313 + $0x48] sm:$0xff]
    %v324 = vld [vmem:[%s313 + $0x50] sm:$0xff]
    %v325 = vld [vmem:[%s313 + $0x58] sm:$0xff]
    %v326 = vld [vmem:[%s313 + $0x60] sm:$0xff]
    %v327 = vld [vmem:[%s313 + $0x68] sm:$0xff]
    %v328 = vld [vmem:[%s313 + $0x70] sm:$0xff]
    %v329 = vld [vmem:[%s313 + $0x78] sm:$0xff]
    %v330 = vld [vmem:[%s313 + $0x80] sm:$0xff]
    %v331 = vld [vmem:[%s313 + $0x88] sm:$0xff]
    %v332 = vld [vmem:[%s313 + $0x90] sm:$0xff]
    %v333 = vld [vmem:[%s313 + $0x98] sm:$0xff]
    %v334 = vld [vmem:[%s313 + $0xa0] sm:$0xff]
    %v335 = vld [vmem:[%s313 + $0xa8] sm:$0xff]
    %v336 = vld [vmem:[%s313 + $0xb0] sm:$0xff]
    %v337 = vld [vmem:[%s313 + $0xb8] sm:$0xff]
    %v338 = vld [vmem:[%s313 + $0xc0] sm:$0xff]
    %v339 = vld [vmem:[%s313 + $0xc8] sm:$0xff]
    %v340 = vld [vmem:[%s313 + $0xd0] sm:$0xff]
    %v341 = vld [vmem:[%s313 + $0xd8] sm:$0xff]
    %v342 = vld [vmem:[%s313 + $0xe0] sm:$0xff]
    %v343 = vld [vmem:[%s313 + $0xe8] sm:$0xff]
    %v344 = vld [vmem:[%s313 + $0xf0] sm:$0xff]
    %v345 = vld [vmem:[%s313 + $0xf8] sm:$0xff]
    %v346 = vld [vmem:[%s313 + $0x100] sm:$0xff]
    %v347 = vld [vmem:[%s313 + $0x108] sm:$0xff]
    %v348 = vld [vmem:[%s313 + $0x110] sm:$0xff]
    %v349 = vld [vmem:[%s313 + $0x118] sm:$0xff]
    %v350 = vld [vmem:[%s313 + $0x120] sm:$0xff]
    %v351 = vld [vmem:[%s313 + $0x128] sm:$0xff]
    %v352 = vld [vmem:[%s313 + $0x130] sm:$0xff]
    %v353 = vld [vmem:[%s313 + $0x138] sm:$0xff]
    %v354 = vld [vmem:[%s313 + $0x140] sm:$0xff]
    %v355 = vld [vmem:[%s313 + $0x148] sm:$0xff]
    %v356 = vld [vmem:[%s313 + $0x150] sm:$0xff]
    %v357 = vld [vmem:[%s313 + $0x158] sm:$0xff]
    %v358 = vld [vmem:[%s313 + $0x160] sm:$0xff]
    %v359 = vld [vmem:[%s313 + $0x168] sm:$0xff]
    %v360 = vld [vmem:[%s313 + $0x170] sm:$0xff]
    %v361 = vld [vmem:[%s313 + $0x178] sm:$0xff]
    %v362 = vld [vmem:[%s313 + $0x180] sm:$0xff]
    %v363 = vld [vmem:[%s313 + $0x188] sm:$0xff]
    %v364 = vld [vmem:[%s313 + $0x190] sm:$0xff]
    %v365 = vld [vmem:[%s313 + $0x198] sm:$0xff]
    %v366 = vld [vmem:[%s313 + $0x1a0] sm:$0xff]
    %v367 = vld [vmem:[%s313 + $0x1a8] sm:$0xff]
    %v368 = vld [vmem:[%s313 + $0x1b0] sm:$0xff]
    %v369 = vld [vmem:[%s313 + $0x1b8] sm:$0xff]
    %v370 = vld [vmem:[%s313 + $0x1c0] sm:$0xff]
    %v371 = vld [vmem:[%s313 + $0x1c8] sm:$0xff]
    %v372 = vld [vmem:[%s313 + $0x1d0] sm:$0xff]
    %v373 = vld [vmem:[%s313 + $0x1d8] sm:$0xff]
    %v374 = vld [vmem:[%s313 + $0x1e0] sm:$0xff]
    %v375 = vld [vmem:[%s313 + $0x1e8] sm:$0xff]
    %v376 = vld [vmem:[%s313 + $0x1f0] sm:$0xff]
    %v377 = vld [vmem:[%s313 + $0x1f8] sm:$0xff]
    %v378 = vmul.f32 %v314, %v56
    %v379 = vmul.f32 %v315, %v57
    %v380 = vmul.f32 %v316, %v58
    %v381 = vmul.f32 %v317, %v59
    %v382 = vmul.f32 %v318, %v60
    %v383 = vmul.f32 %v319, %v61
    %v384 = vmul.f32 %v320, %v62
    %v385 = vmul.f32 %v321, %v63
    %v386 = vmul.f32 %v322, %v64
    %v387 = vmul.f32 %v323, %v65
    %v388 = vmul.f32 %v324, %v66
    %v389 = vmul.f32 %v325, %v67
    %v390 = vmul.f32 %v326, %v68
    %v391 = vmul.f32 %v327, %v69
    %v392 = vmul.f32 %v328, %v70
    %v393 = vmul.f32 %v329, %v71
    %v394 = vmul.f32 %v330, %v72
    %v395 = vmul.f32 %v331, %v73
    %v396 = vmul.f32 %v332, %v74
    %v397 = vmul.f32 %v333, %v75
    %v398 = vmul.f32 %v334, %v76
    %v399 = vmul.f32 %v335, %v77
    %v400 = vmul.f32 %v336, %v78
    %v401 = vmul.f32 %v337, %v79
    %v402 = vmul.f32 %v338, %v80
    %v403 = vmul.f32 %v339, %v81
    %v404 = vmul.f32 %v340, %v82
    %v405 = vmul.f32 %v341, %v83
    %v406 = vmul.f32 %v342, %v84
    %v407 = vmul.f32 %v343, %v85
    %v408 = vmul.f32 %v344, %v86
    %v409 = vmul.f32 %v345, %v87
    %v410 = vmul.f32 %v346, %v88
    %v411 = vmul.f32 %v347, %v89
    %v412 = vmul.f32 %v348, %v90
    %v413 = vmul.f32 %v349, %v91
    %v414 = vmul.f32 %v350, %v92
    %v415 = vmul.f32 %v351, %v93
    %v416 = vmul.f32 %v352, %v94
    %v417 = vmul.f32 %v353, %v95
    %v418 = vmul.f32 %v354, %v96
    %v419 = vmul.f32 %v355, %v97
    %v420 = vmul.f32 %v356, %v98
    %v421 = vmul.f32 %v357, %v99
    %v422 = vmul.f32 %v358, %v100
    %v423 = vmul.f32 %v359, %v101
    %v424 = vmul.f32 %v360, %v102
    %v425 = vmul.f32 %v361, %v103
    %v426 = vmul.f32 %v362, %v104
    %v427 = vmul.f32 %v363, %v105
    %v428 = vmul.f32 %v364, %v106
    %v429 = vmul.f32 %v365, %v107
    %v430 = vmul.f32 %v366, %v108
    %v431 = vmul.f32 %v367, %v109
    %v432 = vmul.f32 %v368, %v110
    %v433 = vmul.f32 %v369, %v111
    %v434 = vmul.f32 %v370, %v112
    %v435 = vmul.f32 %v371, %v113
    %v436 = vmul.f32 %v372, %v114
    %v437 = vmul.f32 %v373, %v115
    %v438 = vmul.f32 %v374, %v116
    %v439 = vmul.f32 %v375, %v117
    %v440 = vmul.f32 %v376, %v118
    %v441 = vmul.f32 %v377, %v119
    %v442 = vadd.f32 %v249, %v378
    %v443 = vadd.f32 %v250, %v379
    %v444 = vadd.f32 %v251, %v380
    %v445 = vadd.f32 %v252, %v381
    %v446 = vadd.f32 %v253, %v382
    %v447 = vadd.f32 %v254, %v383
    %v448 = vadd.f32 %v255, %v384
    %v449 = vadd.f32 %v256, %v385
    %v450 = vadd.f32 %v257, %v386
    %v451 = vadd.f32 %v258, %v387
    %v452 = vadd.f32 %v259, %v388
    %v453 = vadd.f32 %v260, %v389
    %v454 = vadd.f32 %v261, %v390
    %v455 = vadd.f32 %v262, %v391
    %v456 = vadd.f32 %v263, %v392
    %v457 = vadd.f32 %v264, %v393
    %v458 = vadd.f32 %v265, %v394
    %v459 = vadd.f32 %v266, %v395
    %v460 = vadd.f32 %v267, %v396
    %v461 = vadd.f32 %v268, %v397
    %v462 = vadd.f32 %v269, %v398
    %v463 = vadd.f32 %v270, %v399
    %v464 = vadd.f32 %v271, %v400
    %v465 = vadd.f32 %v272, %v401
    %v466 = vadd.f32 %v273, %v402
    %v467 = vadd.f32 %v274, %v403
    %v468 = vadd.f32 %v275, %v404
    %v469 = vadd.f32 %v276, %v405
    %v470 = vadd.f32 %v277, %v406
    %v471 = vadd.f32 %v278, %v407
    %v472 = vadd.f32 %v279, %v408
    %v473 = vadd.f32 %v280, %v409
    %v474 = vadd.f32 %v281, %v410
    %v475 = vadd.f32 %v282, %v411
    %v476 = vadd.f32 %v283, %v412
    %v477 = vadd.f32 %v284, %v413
    %v478 = vadd.f32 %v285, %v414
    %v479 = vadd.f32 %v286, %v415
    %v480 = vadd.f32 %v287, %v416
    %v481 = vadd.f32 %v288, %v417
    %v482 = vadd.f32 %v289, %v418
    %v483 = vadd.f32 %v290, %v419
    %v484 = vadd.f32 %v291, %v420
    %v485 = vadd.f32 %v292, %v421
    %v486 = vadd.f32 %v293, %v422
    %v487 = vadd.f32 %v294, %v423
    %v488 = vadd.f32 %v295, %v424
    %v489 = vadd.f32 %v296, %v425
    %v490 = vadd.f32 %v297, %v426
    %v491 = vadd.f32 %v298, %v427
    %v492 = vadd.f32 %v299, %v428
    %v493 = vadd.f32 %v300, %v429
    %v494 = vadd.f32 %v301, %v430
    %v495 = vadd.f32 %v302, %v431
    %v496 = vadd.f32 %v303, %v432
    %v497 = vadd.f32 %v304, %v433
    %v498 = vadd.f32 %v305, %v434
    %v499 = vadd.f32 %v306, %v435
    %v500 = vadd.f32 %v307, %v436
    %v501 = vadd.f32 %v308, %v437
    %v502 = vadd.f32 %v309, %v438
    %v503 = vadd.f32 %v310, %v439
    %v504 = vadd.f32 %v311, %v440
    %v505 = vadd.f32 %v312, %v441
    %s506 = scalar_lea.vmem [#allocation7], 3584
    %v507 = vld [vmem:[%s506] sm:$0xff]
    %v508 = vld [vmem:[%s506 + $0x8] sm:$0xff]
    %v509 = vld [vmem:[%s506 + $0x10] sm:$0xff]
    %v510 = vld [vmem:[%s506 + $0x18] sm:$0xff]
    %v511 = vld [vmem:[%s506 + $0x20] sm:$0xff]
    %v512 = vld [vmem:[%s506 + $0x28] sm:$0xff]
    %v513 = vld [vmem:[%s506 + $0x30] sm:$0xff]
    %v514 = vld [vmem:[%s506 + $0x38] sm:$0xff]
    %v515 = vld [vmem:[%s506 + $0x40] sm:$0xff]
    %v516 = vld [vmem:[%s506 + $0x48] sm:$0xff]
    %v517 = vld [vmem:[%s506 + $0x50] sm:$0xff]
    %v518 = vld [vmem:[%s506 + $0x58] sm:$0xff]
    %v519 = vld [vmem:[%s506 + $0x60] sm:$0xff]
    %v520 = vld [vmem:[%s506 + $0x68] sm:$0xff]
    %v521 = vld [vmem:[%s506 + $0x70] sm:$0xff]
    %v522 = vld [vmem:[%s506 + $0x78] sm:$0xff]
    %v523 = vld [vmem:[%s506 + $0x80] sm:$0xff]
    %v524 = vld [vmem:[%s506 + $0x88] sm:$0xff]
    %v525 = vld [vmem:[%s506 + $0x90] sm:$0xff]
    %v526 = vld [vmem:[%s506 + $0x98] sm:$0xff]
    %v527 = vld [vmem:[%s506 + $0xa0] sm:$0xff]
    %v528 = vld [vmem:[%s506 + $0xa8] sm:$0xff]
    %v529 = vld [vmem:[%s506 + $0xb0] sm:$0xff]
    %v530 = vld [vmem:[%s506 + $0xb8] sm:$0xff]
    %v531 = vld [vmem:[%s506 + $0xc0] sm:$0xff]
    %v532 = vld [vmem:[%s506 + $0xc8] sm:$0xff]
    %v533 = vld [vmem:[%s506 + $0xd0] sm:$0xff]
    %v534 = vld [vmem:[%s506 + $0xd8] sm:$0xff]
    %v535 = vld [vmem:[%s506 + $0xe0] sm:$0xff]
    %v536 = vld [vmem:[%s506 + $0xe8] sm:$0xff]
    %v537 = vld [vmem:[%s506 + $0xf0] sm:$0xff]
    %v538 = vld [vmem:[%s506 + $0xf8] sm:$0xff]
    %v539 = vld [vmem:[%s506 + $0x100] sm:$0xff]
    %v540 = vld [vmem:[%s506 + $0x108] sm:$0xff]
    %v541 = vld [vmem:[%s506 + $0x110] sm:$0xff]
    %v542 = vld [vmem:[%s506 + $0x118] sm:$0xff]
    %v543 = vld [vmem:[%s506 + $0x120] sm:$0xff]
    %v544 = vld [vmem:[%s506 + $0x128] sm:$0xff]
    %v545 = vld [vmem:[%s506 + $0x130] sm:$0xff]
    %v546 = vld [vmem:[%s506 + $0x138] sm:$0xff]
    %v547 = vld [vmem:[%s506 + $0x140] sm:$0xff]
    %v548 = vld [vmem:[%s506 + $0x148] sm:$0xff]
    %v549 = vld [vmem:[%s506 + $0x150] sm:$0xff]
    %v550 = vld [vmem:[%s506 + $0x158] sm:$0xff]
    %v551 = vld [vmem:[%s506 + $0x160] sm:$0xff]
    %v552 = vld [vmem:[%s506 + $0x168] sm:$0xff]
    %v553 = vld [vmem:[%s506 + $0x170] sm:$0xff]
    %v554 = vld [vmem:[%s506 + $0x178] sm:$0xff]
    %v555 = vld [vmem:[%s506 + $0x180] sm:$0xff]
    %v556 = vld [vmem:[%s506 + $0x188] sm:$0xff]
    %v557 = vld [vmem:[%s506 + $0x190] sm:$0xff]
    %v558 = vld [vmem:[%s506 + $0x198] sm:$0xff]
    %v559 = vld [vmem:[%s506 + $0x1a0] sm:$0xff]
    %v560 = vld [vmem:[%s506 + $0x1a8] sm:$0xff]
    %v561 = vld [vmem:[%s506 + $0x1b0] sm:$0xff]
    %v562 = vld [vmem:[%s506 + $0x1b8] sm:$0xff]
    %v563 = vld [vmem:[%s506 + $0x1c0] sm:$0xff]
    %v564 = vld [vmem:[%s506 + $0x1c8] sm:$0xff]
    %v565 = vld [vmem:[%s506 + $0x1d0] sm:$0xff]
    %v566 = vld [vmem:[%s506 + $0x1d8] sm:$0xff]
    %v567 = vld [vmem:[%s506 + $0x1e0] sm:$0xff]
    %v568 = vld [vmem:[%s506 + $0x1e8] sm:$0xff]
    %v569 = vld [vmem:[%s506 + $0x1f0] sm:$0xff]
    %v570 = vld [vmem:[%s506 + $0x1f8] sm:$0xff]
    %v571 = vmul.f32 %v507, %v120
    %v572 = vmul.f32 %v508, %v121
    %v573 = vmul.f32 %v509, %v122
    %v574 = vmul.f32 %v510, %v123
    %v575 = vmul.f32 %v511, %v124
    %v576 = vmul.f32 %v512, %v125
    %v577 = vmul.f32 %v513, %v126
    %v578 = vmul.f32 %v514, %v127
    %v579 = vmul.f32 %v515, %v128
    %v580 = vmul.f32 %v516, %v129
    %v581 = vmul.f32 %v517, %v130
    %v582 = vmul.f32 %v518, %v131
    %v583 = vmul.f32 %v519, %v132
    %v584 = vmul.f32 %v520, %v133
    %v585 = vmul.f32 %v521, %v134
    %v586 = vmul.f32 %v522, %v135
    %v587 = vmul.f32 %v523, %v136
    %v588 = vmul.f32 %v524, %v137
    %v589 = vmul.f32 %v525, %v138
    %v590 = vmul.f32 %v526, %v139
    %v591 = vmul.f32 %v527, %v140
    %v592 = vmul.f32 %v528, %v141
    %v593 = vmul.f32 %v529, %v142
    %v594 = vmul.f32 %v530, %v143
    %v595 = vmul.f32 %v531, %v144
    %v596 = vmul.f32 %v532, %v145
    %v597 = vmul.f32 %v533, %v146
    %v598 = vmul.f32 %v534, %v147
    %v599 = vmul.f32 %v535, %v148
    %v600 = vmul.f32 %v536, %v149
    %v601 = vmul.f32 %v537, %v150
    %v602 = vmul.f32 %v538, %v151
    %v603 = vmul.f32 %v539, %v152
    %v604 = vmul.f32 %v540, %v153
    %v605 = vmul.f32 %v541, %v154
    %v606 = vmul.f32 %v542, %v155
    %v607 = vmul.f32 %v543, %v156
    %v608 = vmul.f32 %v544, %v157
    %v609 = vmul.f32 %v545, %v158
    %v610 = vmul.f32 %v546, %v159
    %v611 = vmul.f32 %v547, %v160
    %v612 = vmul.f32 %v548, %v161
    %v613 = vmul.f32 %v549, %v162
    %v614 = vmul.f32 %v550, %v163
    %v615 = vmul.f32 %v551, %v164
    %v616 = vmul.f32 %v552, %v165
    %v617 = vmul.f32 %v553, %v166
    %v618 = vmul.f32 %v554, %v167
    %v619 = vmul.f32 %v555, %v168
    %v620 = vmul.f32 %v556, %v169
    %v621 = vmul.f32 %v557, %v170
    %v622 = vmul.f32 %v558, %v171
    %v623 = vmul.f32 %v559, %v172
    %v624 = vmul.f32 %v560, %v173
    %v625 = vmul.f32 %v561, %v174
    %v626 = vmul.f32 %v562, %v175
    %v627 = vmul.f32 %v563, %v176
    %v628 = vmul.f32 %v564, %v177
    %v629 = vmul.f32 %v565, %v178
    %v630 = vmul.f32 %v566, %v179
    %v631 = vmul.f32 %v567, %v180
    %v632 = vmul.f32 %v568, %v181
    %v633 = vmul.f32 %v569, %v182
    %v634 = vmul.f32 %v570, %v183
    %v635 = vadd.f32 %v442, %v571
    %v636 = vadd.f32 %v443, %v572
    %v637 = vadd.f32 %v444, %v573
    %v638 = vadd.f32 %v445, %v574
    %v639 = vadd.f32 %v446, %v575
    %v640 = vadd.f32 %v447, %v576
    %v641 = vadd.f32 %v448, %v577
    %v642 = vadd.f32 %v449, %v578
    %v643 = vadd.f32 %v450, %v579
    %v644 = vadd.f32 %v451, %v580
    %v645 = vadd.f32 %v452, %v581
    %v646 = vadd.f32 %v453, %v582
    %v647 = vadd.f32 %v454, %v583
    %v648 = vadd.f32 %v455, %v584
    %v649 = vadd.f32 %v456, %v585
    %v650 = vadd.f32 %v457, %v586
    %v651 = vadd.f32 %v458, %v587
    %v652 = vadd.f32 %v459, %v588
    %v653 = vadd.f32 %v460, %v589
    %v654 = vadd.f32 %v461, %v590
    %v655 = vadd.f32 %v462, %v591
    %v656 = vadd.f32 %v463, %v592
    %v657 = vadd.f32 %v464, %v593
    %v658 = vadd.f32 %v465, %v594
    %v659 = vadd.f32 %v466, %v595
    %v660 = vadd.f32 %v467, %v596
    %v661 = vadd.f32 %v468, %v597
    %v662 = vadd.f32 %v469, %v598
    %v663 = vadd.f32 %v470, %v599
    %v664 = vadd.f32 %v471, %v600
    %v665 = vadd.f32 %v472, %v601
    %v666 = vadd.f32 %v473, %v602
    %v667 = vadd.f32 %v474, %v603
    %v668 = vadd.f32 %v475, %v604
    %v669 = vadd.f32 %v476, %v605
    %v670 = vadd.f32 %v477, %v606
    %v671 = vadd.f32 %v478, %v607
    %v672 = vadd.f32 %v479, %v608
    %v673 = vadd.f32 %v480, %v609
    %v674 = vadd.f32 %v481, %v610
    %v675 = vadd.f32 %v482, %v611
    %v676 = vadd.f32 %v483, %v612
    %v677 = vadd.f32 %v484, %v613
    %v678 = vadd.f32 %v485, %v614
    %v679 = vadd.f32 %v486, %v615
    %v680 = vadd.f32 %v487, %v616
    %v681 = vadd.f32 %v488, %v617
    %v682 = vadd.f32 %v489, %v618
    %v683 = vadd.f32 %v490, %v619
    %v684 = vadd.f32 %v491, %v620
    %v685 = vadd.f32 %v492, %v621
    %v686 = vadd.f32 %v493, %v622
    %v687 = vadd.f32 %v494, %v623
    %v688 = vadd.f32 %v495, %v624
    %v689 = vadd.f32 %v496, %v625
    %v690 = vadd.f32 %v497, %v626
    %v691 = vadd.f32 %v498, %v627
    %v692 = vadd.f32 %v499, %v628
    %v693 = vadd.f32 %v500, %v629
    %v694 = vadd.f32 %v501, %v630
    %v695 = vadd.f32 %v502, %v631
    %v696 = vadd.f32 %v503, %v632
    %v697 = vadd.f32 %v504, %v633
    %v698 = vadd.f32 %v505, %v634
    %s699 = scalar_lea.vmem [#allocation7], 4096
    %v700 = vld [vmem:[%s699] sm:$0xff]
    %v701 = vld [vmem:[%s699 + $0x8] sm:$0xff]
    %v702 = vld [vmem:[%s699 + $0x10] sm:$0xff]
    %v703 = vld [vmem:[%s699 + $0x18] sm:$0xff]
    %v704 = vld [vmem:[%s699 + $0x20] sm:$0xff]
    %v705 = vld [vmem:[%s699 + $0x28] sm:$0xff]
    %v706 = vld [vmem:[%s699 + $0x30] sm:$0xff]
    %v707 = vld [vmem:[%s699 + $0x38] sm:$0xff]
    %v708 = vld [vmem:[%s699 + $0x40] sm:$0xff]
    %v709 = vld [vmem:[%s699 + $0x48] sm:$0xff]
    %v710 = vld [vmem:[%s699 + $0x50] sm:$0xff]
    %v711 = vld [vmem:[%s699 + $0x58] sm:$0xff]
    %v712 = vld [vmem:[%s699 + $0x60] sm:$0xff]
    %v713 = vld [vmem:[%s699 + $0x68] sm:$0xff]
    %v714 = vld [vmem:[%s699 + $0x70] sm:$0xff]
    %v715 = vld [vmem:[%s699 + $0x78] sm:$0xff]
    %v716 = vld [vmem:[%s699 + $0x80] sm:$0xff]
    %v717 = vld [vmem:[%s699 + $0x88] sm:$0xff]
    %v718 = vld [vmem:[%s699 + $0x90] sm:$0xff]
    %v719 = vld [vmem:[%s699 + $0x98] sm:$0xff]
    %v720 = vld [vmem:[%s699 + $0xa0] sm:$0xff]
    %v721 = vld [vmem:[%s699 + $0xa8] sm:$0xff]
    %v722 = vld [vmem:[%s699 + $0xb0] sm:$0xff]
    %v723 = vld [vmem:[%s699 + $0xb8] sm:$0xff]
    %v724 = vld [vmem:[%s699 + $0xc0] sm:$0xff]
    %v725 = vld [vmem:[%s699 + $0xc8] sm:$0xff]
    %v726 = vld [vmem:[%s699 + $0xd0] sm:$0xff]
    %v727 = vld [vmem:[%s699 + $0xd8] sm:$0xff]
    %v728 = vld [vmem:[%s699 + $0xe0] sm:$0xff]
    %v729 = vld [vmem:[%s699 + $0xe8] sm:$0xff]
    %v730 = vld [vmem:[%s699 + $0xf0] sm:$0xff]
    %v731 = vld [vmem:[%s699 + $0xf8] sm:$0xff]
    %v732 = vld [vmem:[%s699 + $0x100] sm:$0xff]
    %v733 = vld [vmem:[%s699 + $0x108] sm:$0xff]
    %v734 = vld [vmem:[%s699 + $0x110] sm:$0xff]
    %v735 = vld [vmem:[%s699 + $0x118] sm:$0xff]
    %v736 = vld [vmem:[%s699 + $0x120] sm:$0xff]
    %v737 = vld [vmem:[%s699 + $0x128] sm:$0xff]
    %v738 = vld [vmem:[%s699 + $0x130] sm:$0xff]
    %v739 = vld [vmem:[%s699 + $0x138] sm:$0xff]
    %v740 = vld [vmem:[%s699 + $0x140] sm:$0xff]
    %v741 = vld [vmem:[%s699 + $0x148] sm:$0xff]
    %v742 = vld [vmem:[%s699 + $0x150] sm:$0xff]
    %v743 = vld [vmem:[%s699 + $0x158] sm:$0xff]
    %v744 = vld [vmem:[%s699 + $0x160] sm:$0xff]
    %v745 = vld [vmem:[%s699 + $0x168] sm:$0xff]
    %v746 = vld [vmem:[%s699 + $0x170] sm:$0xff]
    %v747 = vld [vmem:[%s699 + $0x178] sm:$0xff]
    %v748 = vld [vmem:[%s699 + $0x180] sm:$0xff]
    %v749 = vld [vmem:[%s699 + $0x188] sm:$0xff]
    %v750 = vld [vmem:[%s699 + $0x190] sm:$0xff]
    %v751 = vld [vmem:[%s699 + $0x198] sm:$0xff]
    %v752 = vld [vmem:[%s699 + $0x1a0] sm:$0xff]
    %v753 = vld [vmem:[%s699 + $0x1a8] sm:$0xff]
    %v754 = vld [vmem:[%s699 + $0x1b0] sm:$0xff]
    %v755 = vld [vmem:[%s699 + $0x1b8] sm:$0xff]
    %v756 = vld [vmem:[%s699 + $0x1c0] sm:$0xff]
    %v757 = vld [vmem:[%s699 + $0x1c8] sm:$0xff]
    %v758 = vld [vmem:[%s699 + $0x1d0] sm:$0xff]
    %v759 = vld [vmem:[%s699 + $0x1d8] sm:$0xff]
    %v760 = vld [vmem:[%s699 + $0x1e0] sm:$0xff]
    %v761 = vld [vmem:[%s699 + $0x1e8] sm:$0xff]
    %v762 = vld [vmem:[%s699 + $0x1f0] sm:$0xff]
    %v763 = vld [vmem:[%s699 + $0x1f8] sm:$0xff]
    %v764 = vmul.f32 %v700, %v184
    %v765 = vmul.f32 %v701, %v185
    %v766 = vmul.f32 %v702, %v186
    %v767 = vmul.f32 %v703, %v187
    %v768 = vmul.f32 %v704, %v188
    %v769 = vmul.f32 %v705, %v189
    %v770 = vmul.f32 %v706, %v190
    %v771 = vmul.f32 %v707, %v191
    %v772 = vmul.f32 %v708, %v192
    %v773 = vmul.f32 %v709, %v193
    %v774 = vmul.f32 %v710, %v194
    %v775 = vmul.f32 %v711, %v195
    %v776 = vmul.f32 %v712, %v196
    %v777 = vmul.f32 %v713, %v197
    %v778 = vmul.f32 %v714, %v198
    %v779 = vmul.f32 %v715, %v199
    %v780 = vmul.f32 %v716, %v200
    %v781 = vmul.f32 %v717, %v201
    %v782 = vmul.f32 %v718, %v202
    %v783 = vmul.f32 %v719, %v203
    %v784 = vmul.f32 %v720, %v204
    %v785 = vmul.f32 %v721, %v205
    %v786 = vmul.f32 %v722, %v206
    %v787 = vmul.f32 %v723, %v207
    %v788 = vmul.f32 %v724, %v208
    %v789 = vmul.f32 %v725, %v209
    %v790 = vmul.f32 %v726, %v210
    %v791 = vmul.f32 %v727, %v211
    %v792 = vmul.f32 %v728, %v212
    %v793 = vmul.f32 %v729, %v213
    %v794 = vmul.f32 %v730, %v214
    %v795 = vmul.f32 %v731, %v215
    %v796 = vmul.f32 %v732, %v216
    %v797 = vmul.f32 %v733, %v217
    %v798 = vmul.f32 %v734, %v218
    %v799 = vmul.f32 %v735, %v219
    %v800 = vmul.f32 %v736, %v220
    %v801 = vmul.f32 %v737, %v221
    %v802 = vmul.f32 %v738, %v222
    %v803 = vmul.f32 %v739, %v223
    %v804 = vmul.f32 %v740, %v224
    %v805 = vmul.f32 %v741, %v225
    %v806 = vmul.f32 %v742, %v226
    %v807 = vmul.f32 %v743, %v227
    %v808 = vmul.f32 %v744, %v228
    %v809 = vmul.f32 %v745, %v229
    %v810 = vmul.f32 %v746, %v230
    %v811 = vmul.f32 %v747, %v231
    %v812 = vmul.f32 %v748, %v232
    %v813 = vmul.f32 %v749, %v233
    %v814 = vmul.f32 %v750, %v234
    %v815 = vmul.f32 %v751, %v235
    %v816 = vmul.f32 %v752, %v236
    %v817 = vmul.f32 %v753, %v237
    %v818 = vmul.f32 %v754, %v238
    %v819 = vmul.f32 %v755, %v239
    %v820 = vmul.f32 %v756, %v240
    %v821 = vmul.f32 %v757, %v241
    %v822 = vmul.f32 %v758, %v242
    %v823 = vmul.f32 %v759, %v243
    %v824 = vmul.f32 %v760, %v244
    %v825 = vmul.f32 %v761, %v245
    %v826 = vmul.f32 %v762, %v246
    %v827 = vmul.f32 %v763, %v247
    %v828 = vadd.f32 %v635, %v764
    %v829 = vadd.f32 %v636, %v765
    %v830 = vadd.f32 %v637, %v766
    %v831 = vadd.f32 %v638, %v767
    %v832 = vadd.f32 %v639, %v768
    %v833 = vadd.f32 %v640, %v769
    %v834 = vadd.f32 %v641, %v770
    %v835 = vadd.f32 %v642, %v771
    %v836 = vadd.f32 %v643, %v772
    %v837 = vadd.f32 %v644, %v773
    %v838 = vadd.f32 %v645, %v774
    %v839 = vadd.f32 %v646, %v775
    %v840 = vadd.f32 %v647, %v776
    %v841 = vadd.f32 %v648, %v777
    %v842 = vadd.f32 %v649, %v778
    %v843 = vadd.f32 %v650, %v779
    %v844 = vadd.f32 %v651, %v780
    %v845 = vadd.f32 %v652, %v781
    %v846 = vadd.f32 %v653, %v782
    %v847 = vadd.f32 %v654, %v783
    %v848 = vadd.f32 %v655, %v784
    %v849 = vadd.f32 %v656, %v785
    %v850 = vadd.f32 %v657, %v786
    %v851 = vadd.f32 %v658, %v787
    %v852 = vadd.f32 %v659, %v788
    %v853 = vadd.f32 %v660, %v789
    %v854 = vadd.f32 %v661, %v790
    %v855 = vadd.f32 %v662, %v791
    %v856 = vadd.f32 %v663, %v792
    %v857 = vadd.f32 %v664, %v793
    %v858 = vadd.f32 %v665, %v794
    %v859 = vadd.f32 %v666, %v795
    %v860 = vadd.f32 %v667, %v796
    %v861 = vadd.f32 %v668, %v797
    %v862 = vadd.f32 %v669, %v798
    %v863 = vadd.f32 %v670, %v799
    %v864 = vadd.f32 %v671, %v800
    %v865 = vadd.f32 %v672, %v801
    %v866 = vadd.f32 %v673, %v802
    %v867 = vadd.f32 %v674, %v803
    %v868 = vadd.f32 %v675, %v804
    %v869 = vadd.f32 %v676, %v805
    %v870 = vadd.f32 %v677, %v806
    %v871 = vadd.f32 %v678, %v807
    %v872 = vadd.f32 %v679, %v808
    %v873 = vadd.f32 %v680, %v809
    %v874 = vadd.f32 %v681, %v810
    %v875 = vadd.f32 %v682, %v811
    %v876 = vadd.f32 %v683, %v812
    %v877 = vadd.f32 %v684, %v813
    %v878 = vadd.f32 %v685, %v814
    %v879 = vadd.f32 %v686, %v815
    %v880 = vadd.f32 %v687, %v816
    %v881 = vadd.f32 %v688, %v817
    %v882 = vadd.f32 %v689, %v818
    %v883 = vadd.f32 %v690, %v819
    %v884 = vadd.f32 %v691, %v820
    %v885 = vadd.f32 %v692, %v821
    %v886 = vadd.f32 %v693, %v822
    %v887 = vadd.f32 %v694, %v823
    %v888 = vadd.f32 %v695, %v824
    %v889 = vadd.f32 %v696, %v825
    %v890 = vadd.f32 %v697, %v826
    %v891 = vadd.f32 %v698, %v827
    %v892 = vxor.u32 %v828, 2147483648
    %v893 = vxor.u32 %v829, 2147483648
    %v894 = vxor.u32 %v830, 2147483648
    %v895 = vxor.u32 %v831, 2147483648
    %v896 = vxor.u32 %v832, 2147483648
    %v897 = vxor.u32 %v833, 2147483648
    %v898 = vxor.u32 %v834, 2147483648
    %v899 = vxor.u32 %v835, 2147483648
    %v900 = vxor.u32 %v836, 2147483648
    %v901 = vxor.u32 %v837, 2147483648
    %v902 = vxor.u32 %v838, 2147483648
    %v903 = vxor.u32 %v839, 2147483648
    %v904 = vxor.u32 %v840, 2147483648
    %v905 = vxor.u32 %v841, 2147483648
    %v906 = vxor.u32 %v842, 2147483648
    %v907 = vxor.u32 %v843, 2147483648
    %v908 = vxor.u32 %v844, 2147483648
    %v909 = vxor.u32 %v845, 2147483648
    %v910 = vxor.u32 %v846, 2147483648
    %v911 = vxor.u32 %v847, 2147483648
    %v912 = vxor.u32 %v848, 2147483648
    %v913 = vxor.u32 %v849, 2147483648
    %v914 = vxor.u32 %v850, 2147483648
    %v915 = vxor.u32 %v851, 2147483648
    %v916 = vxor.u32 %v852, 2147483648
    %v917 = vxor.u32 %v853, 2147483648
    %v918 = vxor.u32 %v854, 2147483648
    %v919 = vxor.u32 %v855, 2147483648
    %v920 = vxor.u32 %v856, 2147483648
    %v921 = vxor.u32 %v857, 2147483648
    %v922 = vxor.u32 %v858, 2147483648
    %v923 = vxor.u32 %v859, 2147483648
    %v924 = vxor.u32 %v860, 2147483648
    %v925 = vxor.u32 %v861, 2147483648
    %v926 = vxor.u32 %v862, 2147483648
    %v927 = vxor.u32 %v863, 2147483648
    %v928 = vxor.u32 %v864, 2147483648
    %v929 = vxor.u32 %v865, 2147483648
    %v930 = vxor.u32 %v866, 2147483648
    %v931 = vxor.u32 %v867, 2147483648
    %v932 = vxor.u32 %v868, 2147483648
    %v933 = vxor.u32 %v869, 2147483648
    %v934 = vxor.u32 %v870, 2147483648
    %v935 = vxor.u32 %v871, 2147483648
    %v936 = vxor.u32 %v872, 2147483648
    %v937 = vxor.u32 %v873, 2147483648
    %v938 = vxor.u32 %v874, 2147483648
    %v939 = vxor.u32 %v875, 2147483648
    %v940 = vxor.u32 %v876, 2147483648
    %v941 = vxor.u32 %v877, 2147483648
    %v942 = vxor.u32 %v878, 2147483648
    %v943 = vxor.u32 %v879, 2147483648
    %v944 = vxor.u32 %v880, 2147483648
    %v945 = vxor.u32 %v881, 2147483648
    %v946 = vxor.u32 %v882, 2147483648
    %v947 = vxor.u32 %v883, 2147483648
    %v948 = vxor.u32 %v884, 2147483648
    %v949 = vxor.u32 %v885, 2147483648
    %v950 = vxor.u32 %v886, 2147483648
    %v951 = vxor.u32 %v887, 2147483648
    %v952 = vxor.u32 %v888, 2147483648
    %v953 = vxor.u32 %v889, 2147483648
    %v954 = vxor.u32 %v890, 2147483648
    %v955 = vxor.u32 %v891, 2147483648
    %v956 = vmul.f32 %v892, 1.442695
    %v957 = vpow.pop %v956
    %v958 = vmul.f32 %v893, 1.442695
    %v959 = vpow.pop %v958
    %v960 = vmul.f32 %v894, 1.442695
    %v961 = vpow.pop %v960
    %v962 = vmul.f32 %v895, 1.442695
    %v963 = vpow.pop %v962
    %v964 = vmul.f32 %v896, 1.442695
    %v965 = vpow.pop %v964
    %v966 = vmul.f32 %v897, 1.442695
    %v967 = vpow.pop %v966
    %v968 = vmul.f32 %v898, 1.442695
    %v969 = vpow.pop %v968
    %v970 = vmul.f32 %v899, 1.442695
    %v971 = vpow.pop %v970
    %v972 = vmul.f32 %v900, 1.442695
    %v973 = vpow.pop %v972
    %v974 = vmul.f32 %v901, 1.442695
    %v975 = vpow.pop %v974
    %v976 = vmul.f32 %v902, 1.442695
    %v977 = vpow.pop %v976
    %v978 = vmul.f32 %v903, 1.442695
    %v979 = vpow.pop %v978
    %v980 = vmul.f32 %v904, 1.442695
    %v981 = vpow.pop %v980
    %v982 = vmul.f32 %v905, 1.442695
    %v983 = vpow.pop %v982
    %v984 = vmul.f32 %v906, 1.442695
    %v985 = vpow.pop %v984
    %v986 = vmul.f32 %v907, 1.442695
    %v987 = vpow.pop %v986
    %v988 = vmul.f32 %v908, 1.442695
    %v989 = vpow.pop %v988
    %v990 = vmul.f32 %v909, 1.442695
    %v991 = vpow.pop %v990
    %v992 = vmul.f32 %v910, 1.442695
    %v993 = vpow.pop %v992
    %v994 = vmul.f32 %v911, 1.442695
    %v995 = vpow.pop %v994
    %v996 = vmul.f32 %v912, 1.442695
    %v997 = vpow.pop %v996
    %v998 = vmul.f32 %v913, 1.442695
    %v999 = vpow.pop %v998
    %v1000 = vmul.f32 %v914, 1.442695
    %v1001 = vpow.pop %v1000
    %v1002 = vmul.f32 %v915, 1.442695
    %v1003 = vpow.pop %v1002
    %v1004 = vmul.f32 %v916, 1.442695
    %v1005 = vpow.pop %v1004
    %v1006 = vmul.f32 %v917, 1.442695
    %v1007 = vpow.pop %v1006
    %v1008 = vmul.f32 %v918, 1.442695
    %v1009 = vpow.pop %v1008
    %v1010 = vmul.f32 %v919, 1.442695
    %v1011 = vpow.pop %v1010
    %v1012 = vmul.f32 %v920, 1.442695
    %v1013 = vpow.pop %v1012
    %v1014 = vmul.f32 %v921, 1.442695
    %v1015 = vpow.pop %v1014
    %v1016 = vmul.f32 %v922, 1.442695
    %v1017 = vpow.pop %v1016
    %v1018 = vmul.f32 %v923, 1.442695
    %v1019 = vpow.pop %v1018
    %v1020 = vmul.f32 %v924, 1.442695
    %v1021 = vpow.pop %v1020
    %v1022 = vmul.f32 %v925, 1.442695
    %v1023 = vpow.pop %v1022
    %v1024 = vmul.f32 %v926, 1.442695
    %v1025 = vpow.pop %v1024
    %v1026 = vmul.f32 %v927, 1.442695
    %v1027 = vpow.pop %v1026
    %v1028 = vmul.f32 %v928, 1.442695
    %v1029 = vpow.pop %v1028
    %v1030 = vmul.f32 %v929, 1.442695
    %v1031 = vpow.pop %v1030
    %v1032 = vmul.f32 %v930, 1.442695
    %v1033 = vpow.pop %v1032
    %v1034 = vmul.f32 %v931, 1.442695
    %v1035 = vpow.pop %v1034
    %v1036 = vmul.f32 %v932, 1.442695
    %v1037 = vpow.pop %v1036
    %v1038 = vmul.f32 %v933, 1.442695
    %v1039 = vpow.pop %v1038
    %v1040 = vmul.f32 %v934, 1.442695
    %v1041 = vpow.pop %v1040
    %v1042 = vmul.f32 %v935, 1.442695
    %v1043 = vpow.pop %v1042
    %v1044 = vmul.f32 %v936, 1.442695
    %v1045 = vpow.pop %v1044
    %v1046 = vmul.f32 %v937, 1.442695
    %v1047 = vpow.pop %v1046
    %v1048 = vmul.f32 %v938, 1.442695
    %v1049 = vpow.pop %v1048
    %v1050 = vmul.f32 %v939, 1.442695
    %v1051 = vpow.pop %v1050
    %v1052 = vmul.f32 %v940, 1.442695
    %v1053 = vpow.pop %v1052
    %v1054 = vmul.f32 %v941, 1.442695
    %v1055 = vpow.pop %v1054
    %v1056 = vmul.f32 %v942, 1.442695
    %v1057 = vpow.pop %v1056
    %v1058 = vmul.f32 %v943, 1.442695
    %v1059 = vpow.pop %v1058
    %v1060 = vmul.f32 %v944, 1.442695
    %v1061 = vpow.pop %v1060
    %v1062 = vmul.f32 %v945, 1.442695
    %v1063 = vpow.pop %v1062
    %v1064 = vmul.f32 %v946, 1.442695
    %v1065 = vpow.pop %v1064
    %v1066 = vmul.f32 %v947, 1.442695
    %v1067 = vpow.pop %v1066
    %v1068 = vmul.f32 %v948, 1.442695
    %v1069 = vpow.pop %v1068
    %v1070 = vmul.f32 %v949, 1.442695
    %v1071 = vpow.pop %v1070
    %v1072 = vmul.f32 %v950, 1.442695
    %v1073 = vpow.pop %v1072
    %v1074 = vmul.f32 %v951, 1.442695
    %v1075 = vpow.pop %v1074
    %v1076 = vmul.f32 %v952, 1.442695
    %v1077 = vpow.pop %v1076
    %v1078 = vmul.f32 %v953, 1.442695
    %v1079 = vpow.pop %v1078
    %v1080 = vmul.f32 %v954, 1.442695
    %v1081 = vpow.pop %v1080
    %v1082 = vmul.f32 %v955, 1.442695
    %v1083 = vpow.pop %v1082
    %v1084 = vadd.f32 %v957, 1.0
    %v1085 = vadd.f32 %v959, 1.0
    %v1086 = vadd.f32 %v961, 1.0
    %v1087 = vadd.f32 %v963, 1.0
    %v1088 = vadd.f32 %v965, 1.0
    %v1089 = vadd.f32 %v967, 1.0
    %v1090 = vadd.f32 %v969, 1.0
    %v1091 = vadd.f32 %v971, 1.0
    %v1092 = vadd.f32 %v973, 1.0
    %v1093 = vadd.f32 %v975, 1.0
    %v1094 = vadd.f32 %v977, 1.0
    %v1095 = vadd.f32 %v979, 1.0
    %v1096 = vadd.f32 %v981, 1.0
    %v1097 = vadd.f32 %v983, 1.0
    %v1098 = vadd.f32 %v985, 1.0
    %v1099 = vadd.f32 %v987, 1.0
    %v1100 = vadd.f32 %v989, 1.0
    %v1101 = vadd.f32 %v991, 1.0
    %v1102 = vadd.f32 %v993, 1.0
    %v1103 = vadd.f32 %v995, 1.0
    %v1104 = vadd.f32 %v997, 1.0
    %v1105 = vadd.f32 %v999, 1.0
    %v1106 = vadd.f32 %v1001, 1.0
    %v1107 = vadd.f32 %v1003, 1.0
    %v1108 = vadd.f32 %v1005, 1.0
    %v1109 = vadd.f32 %v1007, 1.0
    %v1110 = vadd.f32 %v1009, 1.0
    %v1111 = vadd.f32 %v1011, 1.0
    %v1112 = vadd.f32 %v1013, 1.0
    %v1113 = vadd.f32 %v1015, 1.0
    %v1114 = vadd.f32 %v1017, 1.0
    %v1115 = vadd.f32 %v1019, 1.0
    %v1116 = vadd.f32 %v1021, 1.0
    %v1117 = vadd.f32 %v1023, 1.0
    %v1118 = vadd.f32 %v1025, 1.0
    %v1119 = vadd.f32 %v1027, 1.0
    %v1120 = vadd.f32 %v1029, 1.0
    %v1121 = vadd.f32 %v1031, 1.0
    %v1122 = vadd.f32 %v1033, 1.0
    %v1123 = vadd.f32 %v1035, 1.0
    %v1124 = vadd.f32 %v1037, 1.0
    %v1125 = vadd.f32 %v1039, 1.0
    %v1126 = vadd.f32 %v1041, 1.0
    %v1127 = vadd.f32 %v1043, 1.0
    %v1128 = vadd.f32 %v1045, 1.0
    %v1129 = vadd.f32 %v1047, 1.0
    %v1130 = vadd.f32 %v1049, 1.0
    %v1131 = vadd.f32 %v1051, 1.0
    %v1132 = vadd.f32 %v1053, 1.0
    %v1133 = vadd.f32 %v1055, 1.0
    %v1134 = vadd.f32 %v1057, 1.0
    %v1135 = vadd.f32 %v1059, 1.0
    %v1136 = vadd.f32 %v1061, 1.0
    %v1137 = vadd.f32 %v1063, 1.0
    %v1138 = vadd.f32 %v1065, 1.0
    %v1139 = vadd.f32 %v1067, 1.0
    %v1140 = vadd.f32 %v1069, 1.0
    %v1141 = vadd.f32 %v1071, 1.0
    %v1142 = vadd.f32 %v1073, 1.0
    %v1143 = vadd.f32 %v1075, 1.0
    %v1144 = vadd.f32 %v1077, 1.0
    %v1145 = vadd.f32 %v1079, 1.0
    %v1146 = vadd.f32 %v1081, 1.0
    %v1147 = vadd.f32 %v1083, 1.0
    %v1148 = vrcp.pop %v1084
    %v1149 = vmul.f32 1.0, %v1148
    %v1150 = vrcp.pop %v1085
    %v1151 = vmul.f32 1.0, %v1150
    %v1152 = vrcp.pop %v1086
    %v1153 = vmul.f32 1.0, %v1152
    %v1154 = vrcp.pop %v1087
    %v1155 = vmul.f32 1.0, %v1154
    %v1156 = vrcp.pop %v1088
    %v1157 = vmul.f32 1.0, %v1156
    %v1158 = vrcp.pop %v1089
    %v1159 = vmul.f32 1.0, %v1158
    %v1160 = vrcp.pop %v1090
    %v1161 = vmul.f32 1.0, %v1160
    %v1162 = vrcp.pop %v1091
    %v1163 = vmul.f32 1.0, %v1162
    %v1164 = vrcp.pop %v1092
    %v1165 = vmul.f32 1.0, %v1164
    %v1166 = vrcp.pop %v1093
    %v1167 = vmul.f32 1.0, %v1166
    %v1168 = vrcp.pop %v1094
    %v1169 = vmul.f32 1.0, %v1168
    %v1170 = vrcp.pop %v1095
    %v1171 = vmul.f32 1.0, %v1170
    %v1172 = vrcp.pop %v1096
    %v1173 = vmul.f32 1.0, %v1172
    %v1174 = vrcp.pop %v1097
    %v1175 = vmul.f32 1.0, %v1174
    %v1176 = vrcp.pop %v1098
    %v1177 = vmul.f32 1.0, %v1176
    %v1178 = vrcp.pop %v1099
    %v1179 = vmul.f32 1.0, %v1178
    %v1180 = vrcp.pop %v1100
    %v1181 = vmul.f32 1.0, %v1180
    %v1182 = vrcp.pop %v1101
    %v1183 = vmul.f32 1.0, %v1182
    %v1184 = vrcp.pop %v1102
    %v1185 = vmul.f32 1.0, %v1184
    %v1186 = vrcp.pop %v1103
    %v1187 = vmul.f32 1.0, %v1186
    %v1188 = vrcp.pop %v1104
    %v1189 = vmul.f32 1.0, %v1188
    %v1190 = vrcp.pop %v1105
    %v1191 = vmul.f32 1.0, %v1190
    %v1192 = vrcp.pop %v1106
    %v1193 = vmul.f32 1.0, %v1192
    %v1194 = vrcp.pop %v1107
    %v1195 = vmul.f32 1.0, %v1194
    %v1196 = vrcp.pop %v1108
    %v1197 = vmul.f32 1.0, %v1196
    %v1198 = vrcp.pop %v1109
    %v1199 = vmul.f32 1.0, %v1198
    %v1200 = vrcp.pop %v1110
    %v1201 = vmul.f32 1.0, %v1200
    %v1202 = vrcp.pop %v1111
    %v1203 = vmul.f32 1.0, %v1202
    %v1204 = vrcp.pop %v1112
    %v1205 = vmul.f32 1.0, %v1204
    %v1206 = vrcp.pop %v1113
    %v1207 = vmul.f32 1.0, %v1206
    %v1208 = vrcp.pop %v1114
    %v1209 = vmul.f32 1.0, %v1208
    %v1210 = vrcp.pop %v1115
    %v1211 = vmul.f32 1.0, %v1210
    %v1212 = vrcp.pop %v1116
    %v1213 = vmul.f32 1.0, %v1212
    %v1214 = vrcp.pop %v1117
    %v1215 = vmul.f32 1.0, %v1214
    %v1216 = vrcp.pop %v1118
    %v1217 = vmul.f32 1.0, %v1216
    %v1218 = vrcp.pop %v1119
    %v1219 = vmul.f32 1.0, %v1218
    %v1220 = vrcp.pop %v1120
    %v1221 = vmul.f32 1.0, %v1220
    %v1222 = vrcp.pop %v1121
    %v1223 = vmul.f32 1.0, %v1222
    %v1224 = vrcp.pop %v1122
    %v1225 = vmul.f32 1.0, %v1224
    %v1226 = vrcp.pop %v1123
    %v1227 = vmul.f32 1.0, %v1226
    %v1228 = vrcp.pop %v1124
    %v1229 = vmul.f32 1.0, %v1228
    %v1230 = vrcp.pop %v1125
    %v1231 = vmul.f32 1.0, %v1230
    %v1232 = vrcp.pop %v1126
    %v1233 = vmul.f32 1.0, %v1232
    %v1234 = vrcp.pop %v1127
    %v1235 = vmul.f32 1.0, %v1234
    %v1236 = vrcp.pop %v1128
    %v1237 = vmul.f32 1.0, %v1236
    %v1238 = vrcp.pop %v1129
    %v1239 = vmul.f32 1.0, %v1238
    %v1240 = vrcp.pop %v1130
    %v1241 = vmul.f32 1.0, %v1240
    %v1242 = vrcp.pop %v1131
    %v1243 = vmul.f32 1.0, %v1242
    %v1244 = vrcp.pop %v1132
    %v1245 = vmul.f32 1.0, %v1244
    %v1246 = vrcp.pop %v1133
    %v1247 = vmul.f32 1.0, %v1246
    %v1248 = vrcp.pop %v1134
    %v1249 = vmul.f32 1.0, %v1248
    %v1250 = vrcp.pop %v1135
    %v1251 = vmul.f32 1.0, %v1250
    %v1252 = vrcp.pop %v1136
    %v1253 = vmul.f32 1.0, %v1252
    %v1254 = vrcp.pop %v1137
    %v1255 = vmul.f32 1.0, %v1254
    %v1256 = vrcp.pop %v1138
    %v1257 = vmul.f32 1.0, %v1256
    %v1258 = vrcp.pop %v1139
    %v1259 = vmul.f32 1.0, %v1258
    %v1260 = vrcp.pop %v1140
    %v1261 = vmul.f32 1.0, %v1260
    %v1262 = vrcp.pop %v1141
    %v1263 = vmul.f32 1.0, %v1262
    %v1264 = vrcp.pop %v1142
    %v1265 = vmul.f32 1.0, %v1264
    %v1266 = vrcp.pop %v1143
    %v1267 = vmul.f32 1.0, %v1266
    %v1268 = vrcp.pop %v1144
    %v1269 = vmul.f32 1.0, %v1268
    %v1270 = vrcp.pop %v1145
    %v1271 = vmul.f32 1.0, %v1270
    %v1272 = vrcp.pop %v1146
    %v1273 = vmul.f32 1.0, %v1272
    %v1274 = vrcp.pop %v1147
    %v1275 = vmul.f32 1.0, %v1274
    %v1276 = vld [vmem:[#allocation7] sm:$0xff]
    %v1277 = vld [vmem:[#allocation7 + $0x8] sm:$0xff]
    %v1278 = vld [vmem:[#allocation7 + $0x10] sm:$0xff]
    %v1279 = vld [vmem:[#allocation7 + $0x18] sm:$0xff]
    %v1280 = vld [vmem:[#allocation7 + $0x20] sm:$0xff]
    %v1281 = vld [vmem:[#allocation7 + $0x28] sm:$0xff]
    %v1282 = vld [vmem:[#allocation7 + $0x30] sm:$0xff]
    %v1283 = vld [vmem:[#allocation7 + $0x38] sm:$0xff]
    %v1284 = vld [vmem:[#allocation7 + $0x40] sm:$0xff]
    %v1285 = vld [vmem:[#allocation7 + $0x48] sm:$0xff]
    %v1286 = vld [vmem:[#allocation7 + $0x50] sm:$0xff]
    %v1287 = vld [vmem:[#allocation7 + $0x58] sm:$0xff]
    %v1288 = vld [vmem:[#allocation7 + $0x60] sm:$0xff]
    %v1289 = vld [vmem:[#allocation7 + $0x68] sm:$0xff]
    %v1290 = vld [vmem:[#allocation7 + $0x70] sm:$0xff]
    %v1291 = vld [vmem:[#allocation7 + $0x78] sm:$0xff]
    %v1292 = vld [vmem:[#allocation7 + $0x80] sm:$0xff]
    %v1293 = vld [vmem:[#allocation7 + $0x88] sm:$0xff]
    %v1294 = vld [vmem:[#allocation7 + $0x90] sm:$0xff]
    %v1295 = vld [vmem:[#allocation7 + $0x98] sm:$0xff]
    %v1296 = vld [vmem:[#allocation7 + $0xa0] sm:$0xff]
    %v1297 = vld [vmem:[#allocation7 + $0xa8] sm:$0xff]
    %v1298 = vld [vmem:[#allocation7 + $0xb0] sm:$0xff]
    %v1299 = vld [vmem:[#allocation7 + $0xb8] sm:$0xff]
    %v1300 = vld [vmem:[#allocation7 + $0xc0] sm:$0xff]
    %v1301 = vld [vmem:[#allocation7 + $0xc8] sm:$0xff]
    %v1302 = vld [vmem:[#allocation7 + $0xd0] sm:$0xff]
    %v1303 = vld [vmem:[#allocation7 + $0xd8] sm:$0xff]
    %v1304 = vld [vmem:[#allocation7 + $0xe0] sm:$0xff]
    %v1305 = vld [vmem:[#allocation7 + $0xe8] sm:$0xff]
    %v1306 = vld [vmem:[#allocation7 + $0xf0] sm:$0xff]
    %v1307 = vld [vmem:[#allocation7 + $0xf8] sm:$0xff]
    %v1308 = vld [vmem:[#allocation7 + $0x100] sm:$0xff]
    %v1309 = vld [vmem:[#allocation7 + $0x108] sm:$0xff]
    %v1310 = vld [vmem:[#allocation7 + $0x110] sm:$0xff]
    %v1311 = vld [vmem:[#allocation7 + $0x118] sm:$0xff]
    %v1312 = vld [vmem:[#allocation7 + $0x120] sm:$0xff]
    %v1313 = vld [vmem:[#allocation7 + $0x128] sm:$0xff]
    %v1314 = vld [vmem:[#allocation7 + $0x130] sm:$0xff]
    %v1315 = vld [vmem:[#allocation7 + $0x138] sm:$0xff]
    %v1316 = vld [vmem:[#allocation7 + $0x140] sm:$0xff]
    %v1317 = vld [vmem:[#allocation7 + $0x148] sm:$0xff]
    %v1318 = vld [vmem:[#allocation7 + $0x150] sm:$0xff]
    %v1319 = vld [vmem:[#allocation7 + $0x158] sm:$0xff]
    %v1320 = vld [vmem:[#allocation7 + $0x160] sm:$0xff]
    %v1321 = vld [vmem:[#allocation7 + $0x168] sm:$0xff]
    %v1322 = vld [vmem:[#allocation7 + $0x170] sm:$0xff]
    %v1323 = vld [vmem:[#allocation7 + $0x178] sm:$0xff]
    %v1324 = vld [vmem:[#allocation7 + $0x180] sm:$0xff]
    %v1325 = vld [vmem:[#allocation7 + $0x188] sm:$0xff]
    %v1326 = vld [vmem:[#allocation7 + $0x190] sm:$0xff]
    %v1327 = vld [vmem:[#allocation7 + $0x198] sm:$0xff]
    %v1328 = vld [vmem:[#allocation7 + $0x1a0] sm:$0xff]
    %v1329 = vld [vmem:[#allocation7 + $0x1a8] sm:$0xff]
    %v1330 = vld [vmem:[#allocation7 + $0x1b0] sm:$0xff]
    %v1331 = vld [vmem:[#allocation7 + $0x1b8] sm:$0xff]
    %v1332 = vld [vmem:[#allocation7 + $0x1c0] sm:$0xff]
    %v1333 = vld [vmem:[#allocation7 + $0x1c8] sm:$0xff]
    %v1334 = vld [vmem:[#allocation7 + $0x1d0] sm:$0xff]
    %v1335 = vld [vmem:[#allocation7 + $0x1d8] sm:$0xff]
    %v1336 = vld [vmem:[#allocation7 + $0x1e0] sm:$0xff]
    %v1337 = vld [vmem:[#allocation7 + $0x1e8] sm:$0xff]
    %v1338 = vld [vmem:[#allocation7 + $0x1f0] sm:$0xff]
    %v1339 = vld [vmem:[#allocation7 + $0x1f8] sm:$0xff]
    %s1340 = scalar_lea.vmem [#allocation7], 512
    %v1341 = vld [vmem:[%s1340] sm:$0xff]
    %v1342 = vld [vmem:[%s1340 + $0x8] sm:$0xff]
    %v1343 = vld [vmem:[%s1340 + $0x10] sm:$0xff]
    %v1344 = vld [vmem:[%s1340 + $0x18] sm:$0xff]
    %v1345 = vld [vmem:[%s1340 + $0x20] sm:$0xff]
    %v1346 = vld [vmem:[%s1340 + $0x28] sm:$0xff]
    %v1347 = vld [vmem:[%s1340 + $0x30] sm:$0xff]
    %v1348 = vld [vmem:[%s1340 + $0x38] sm:$0xff]
    %v1349 = vld [vmem:[%s1340 + $0x40] sm:$0xff]
    %v1350 = vld [vmem:[%s1340 + $0x48] sm:$0xff]
    %v1351 = vld [vmem:[%s1340 + $0x50] sm:$0xff]
    %v1352 = vld [vmem:[%s1340 + $0x58] sm:$0xff]
    %v1353 = vld [vmem:[%s1340 + $0x60] sm:$0xff]
    %v1354 = vld [vmem:[%s1340 + $0x68] sm:$0xff]
    %v1355 = vld [vmem:[%s1340 + $0x70] sm:$0xff]
    %v1356 = vld [vmem:[%s1340 + $0x78] sm:$0xff]
    %v1357 = vld [vmem:[%s1340 + $0x80] sm:$0xff]
    %v1358 = vld [vmem:[%s1340 + $0x88] sm:$0xff]
    %v1359 = vld [vmem:[%s1340 + $0x90] sm:$0xff]
    %v1360 = vld [vmem:[%s1340 + $0x98] sm:$0xff]
    %v1361 = vld [vmem:[%s1340 + $0xa0] sm:$0xff]
    %v1362 = vld [vmem:[%s1340 + $0xa8] sm:$0xff]
    %v1363 = vld [vmem:[%s1340 + $0xb0] sm:$0xff]
    %v1364 = vld [vmem:[%s1340 + $0xb8] sm:$0xff]
    %v1365 = vld [vmem:[%s1340 + $0xc0] sm:$0xff]
    %v1366 = vld [vmem:[%s1340 + $0xc8] sm:$0xff]
    %v1367 = vld [vmem:[%s1340 + $0xd0] sm:$0xff]
    %v1368 = vld [vmem:[%s1340 + $0xd8] sm:$0xff]
    %v1369 = vld [vmem:[%s1340 + $0xe0] sm:$0xff]
    %v1370 = vld [vmem:[%s1340 + $0xe8] sm:$0xff]
    %v1371 = vld [vmem:[%s1340 + $0xf0] sm:$0xff]
    %v1372 = vld [vmem:[%s1340 + $0xf8] sm:$0xff]
    %v1373 = vld [vmem:[%s1340 + $0x100] sm:$0xff]
    %v1374 = vld [vmem:[%s1340 + $0x108] sm:$0xff]
    %v1375 = vld [vmem:[%s1340 + $0x110] sm:$0xff]
    %v1376 = vld [vmem:[%s1340 + $0x118] sm:$0xff]
    %v1377 = vld [vmem:[%s1340 + $0x120] sm:$0xff]
    %v1378 = vld [vmem:[%s1340 + $0x128] sm:$0xff]
    %v1379 = vld [vmem:[%s1340 + $0x130] sm:$0xff]
    %v1380 = vld [vmem:[%s1340 + $0x138] sm:$0xff]
    %v1381 = vld [vmem:[%s1340 + $0x140] sm:$0xff]
    %v1382 = vld [vmem:[%s1340 + $0x148] sm:$0xff]
    %v1383 = vld [vmem:[%s1340 + $0x150] sm:$0xff]
    %v1384 = vld [vmem:[%s1340 + $0x158] sm:$0xff]
    %v1385 = vld [vmem:[%s1340 + $0x160] sm:$0xff]
    %v1386 = vld [vmem:[%s1340 + $0x168] sm:$0xff]
    %v1387 = vld [vmem:[%s1340 + $0x170] sm:$0xff]
    %v1388 = vld [vmem:[%s1340 + $0x178] sm:$0xff]
    %v1389 = vld [vmem:[%s1340 + $0x180] sm:$0xff]
    %v1390 = vld [vmem:[%s1340 + $0x188] sm:$0xff]
    %v1391 = vld [vmem:[%s1340 + $0x190] sm:$0xff]
    %v1392 = vld [vmem:[%s1340 + $0x198] sm:$0xff]
    %v1393 = vld [vmem:[%s1340 + $0x1a0] sm:$0xff]
    %v1394 = vld [vmem:[%s1340 + $0x1a8] sm:$0xff]
    %v1395 = vld [vmem:[%s1340 + $0x1b0] sm:$0xff]
    %v1396 = vld [vmem:[%s1340 + $0x1b8] sm:$0xff]
    %v1397 = vld [vmem:[%s1340 + $0x1c0] sm:$0xff]
    %v1398 = vld [vmem:[%s1340 + $0x1c8] sm:$0xff]
    %v1399 = vld [vmem:[%s1340 + $0x1d0] sm:$0xff]
    %v1400 = vld [vmem:[%s1340 + $0x1d8] sm:$0xff]
    %v1401 = vld [vmem:[%s1340 + $0x1e0] sm:$0xff]
    %v1402 = vld [vmem:[%s1340 + $0x1e8] sm:$0xff]
    %v1403 = vld [vmem:[%s1340 + $0x1f0] sm:$0xff]
    %v1404 = vld [vmem:[%s1340 + $0x1f8] sm:$0xff]
    %v1405 = vmul.f32 %v1341, %v56
    %v1406 = vmul.f32 %v1342, %v57
    %v1407 = vmul.f32 %v1343, %v58
    %v1408 = vmul.f32 %v1344, %v59
    %v1409 = vmul.f32 %v1345, %v60
    %v1410 = vmul.f32 %v1346, %v61
    %v1411 = vmul.f32 %v1347, %v62
    %v1412 = vmul.f32 %v1348, %v63
    %v1413 = vmul.f32 %v1349, %v64
    %v1414 = vmul.f32 %v1350, %v65
    %v1415 = vmul.f32 %v1351, %v66
    %v1416 = vmul.f32 %v1352, %v67
    %v1417 = vmul.f32 %v1353, %v68
    %v1418 = vmul.f32 %v1354, %v69
    %v1419 = vmul.f32 %v1355, %v70
    %v1420 = vmul.f32 %v1356, %v71
    %v1421 = vmul.f32 %v1357, %v72
    %v1422 = vmul.f32 %v1358, %v73
    %v1423 = vmul.f32 %v1359, %v74
    %v1424 = vmul.f32 %v1360, %v75
    %v1425 = vmul.f32 %v1361, %v76
    %v1426 = vmul.f32 %v1362, %v77
    %v1427 = vmul.f32 %v1363, %v78
    %v1428 = vmul.f32 %v1364, %v79
    %v1429 = vmul.f32 %v1365, %v80
    %v1430 = vmul.f32 %v1366, %v81
    %v1431 = vmul.f32 %v1367, %v82
    %v1432 = vmul.f32 %v1368, %v83
    %v1433 = vmul.f32 %v1369, %v84
    %v1434 = vmul.f32 %v1370, %v85
    %v1435 = vmul.f32 %v1371, %v86
    %v1436 = vmul.f32 %v1372, %v87
    %v1437 = vmul.f32 %v1373, %v88
    %v1438 = vmul.f32 %v1374, %v89
    %v1439 = vmul.f32 %v1375, %v90
    %v1440 = vmul.f32 %v1376, %v91
    %v1441 = vmul.f32 %v1377, %v92
    %v1442 = vmul.f32 %v1378, %v93
    %v1443 = vmul.f32 %v1379, %v94
    %v1444 = vmul.f32 %v1380, %v95
    %v1445 = vmul.f32 %v1381, %v96
    %v1446 = vmul.f32 %v1382, %v97
    %v1447 = vmul.f32 %v1383, %v98
    %v1448 = vmul.f32 %v1384, %v99
    %v1449 = vmul.f32 %v1385, %v100
    %v1450 = vmul.f32 %v1386, %v101
    %v1451 = vmul.f32 %v1387, %v102
    %v1452 = vmul.f32 %v1388, %v103
    %v1453 = vmul.f32 %v1389, %v104
    %v1454 = vmul.f32 %v1390, %v105
    %v1455 = vmul.f32 %v1391, %v106
    %v1456 = vmul.f32 %v1392, %v107
    %v1457 = vmul.f32 %v1393, %v108
    %v1458 = vmul.f32 %v1394, %v109
    %v1459 = vmul.f32 %v1395, %v110
    %v1460 = vmul.f32 %v1396, %v111
    %v1461 = vmul.f32 %v1397, %v112
    %v1462 = vmul.f32 %v1398, %v113
    %v1463 = vmul.f32 %v1399, %v114
    %v1464 = vmul.f32 %v1400, %v115
    %v1465 = vmul.f32 %v1401, %v116
    %v1466 = vmul.f32 %v1402, %v117
    %v1467 = vmul.f32 %v1403, %v118
    %v1468 = vmul.f32 %v1404, %v119
    %v1469 = vadd.f32 %v1276, %v1405
    %v1470 = vadd.f32 %v1277, %v1406
    %v1471 = vadd.f32 %v1278, %v1407
    %v1472 = vadd.f32 %v1279, %v1408
    %v1473 = vadd.f32 %v1280, %v1409
    %v1474 = vadd.f32 %v1281, %v1410
    %v1475 = vadd.f32 %v1282, %v1411
    %v1476 = vadd.f32 %v1283, %v1412
    %v1477 = vadd.f32 %v1284, %v1413
    %v1478 = vadd.f32 %v1285, %v1414
    %v1479 = vadd.f32 %v1286, %v1415
    %v1480 = vadd.f32 %v1287, %v1416
    %v1481 = vadd.f32 %v1288, %v1417
    %v1482 = vadd.f32 %v1289, %v1418
    %v1483 = vadd.f32 %v1290, %v1419
    %v1484 = vadd.f32 %v1291, %v1420
    %v1485 = vadd.f32 %v1292, %v1421
    %v1486 = vadd.f32 %v1293, %v1422
    %v1487 = vadd.f32 %v1294, %v1423
    %v1488 = vadd.f32 %v1295, %v1424
    %v1489 = vadd.f32 %v1296, %v1425
    %v1490 = vadd.f32 %v1297, %v1426
    %v1491 = vadd.f32 %v1298, %v1427
    %v1492 = vadd.f32 %v1299, %v1428
    %v1493 = vadd.f32 %v1300, %v1429
    %v1494 = vadd.f32 %v1301, %v1430
    %v1495 = vadd.f32 %v1302, %v1431
    %v1496 = vadd.f32 %v1303, %v1432
    %v1497 = vadd.f32 %v1304, %v1433
    %v1498 = vadd.f32 %v1305, %v1434
    %v1499 = vadd.f32 %v1306, %v1435
    %v1500 = vadd.f32 %v1307, %v1436
    %v1501 = vadd.f32 %v1308, %v1437
    %v1502 = vadd.f32 %v1309, %v1438
    %v1503 = vadd.f32 %v1310, %v1439
    %v1504 = vadd.f32 %v1311, %v1440
    %v1505 = vadd.f32 %v1312, %v1441
    %v1506 = vadd.f32 %v1313, %v1442
    %v1507 = vadd.f32 %v1314, %v1443
    %v1508 = vadd.f32 %v1315, %v1444
    %v1509 = vadd.f32 %v1316, %v1445
    %v1510 = vadd.f32 %v1317, %v1446
    %v1511 = vadd.f32 %v1318, %v1447
    %v1512 = vadd.f32 %v1319, %v1448
    %v1513 = vadd.f32 %v1320, %v1449
    %v1514 = vadd.f32 %v1321, %v1450
    %v1515 = vadd.f32 %v1322, %v1451
    %v1516 = vadd.f32 %v1323, %v1452
    %v1517 = vadd.f32 %v1324, %v1453
    %v1518 = vadd.f32 %v1325, %v1454
    %v1519 = vadd.f32 %v1326, %v1455
    %v1520 = vadd.f32 %v1327, %v1456
    %v1521 = vadd.f32 %v1328, %v1457
    %v1522 = vadd.f32 %v1329, %v1458
    %v1523 = vadd.f32 %v1330, %v1459
    %v1524 = vadd.f32 %v1331, %v1460
    %v1525 = vadd.f32 %v1332, %v1461
    %v1526 = vadd.f32 %v1333, %v1462
    %v1527 = vadd.f32 %v1334, %v1463
    %v1528 = vadd.f32 %v1335, %v1464
    %v1529 = vadd.f32 %v1336, %v1465
    %v1530 = vadd.f32 %v1337, %v1466
    %v1531 = vadd.f32 %v1338, %v1467
    %v1532 = vadd.f32 %v1339, %v1468
    %s1533 = scalar_lea.vmem [#allocation7], 1024
    %v1534 = vld [vmem:[%s1533] sm:$0xff]
    %v1535 = vld [vmem:[%s1533 + $0x8] sm:$0xff]
    %v1536 = vld [vmem:[%s1533 + $0x10] sm:$0xff]
    %v1537 = vld [vmem:[%s1533 + $0x18] sm:$0xff]
    %v1538 = vld [vmem:[%s1533 + $0x20] sm:$0xff]
    %v1539 = vld [vmem:[%s1533 + $0x28] sm:$0xff]
    %v1540 = vld [vmem:[%s1533 + $0x30] sm:$0xff]
    %v1541 = vld [vmem:[%s1533 + $0x38] sm:$0xff]
    %v1542 = vld [vmem:[%s1533 + $0x40] sm:$0xff]
    %v1543 = vld [vmem:[%s1533 + $0x48] sm:$0xff]
    %v1544 = vld [vmem:[%s1533 + $0x50] sm:$0xff]
    %v1545 = vld [vmem:[%s1533 + $0x58] sm:$0xff]
    %v1546 = vld [vmem:[%s1533 + $0x60] sm:$0xff]
    %v1547 = vld [vmem:[%s1533 + $0x68] sm:$0xff]
    %v1548 = vld [vmem:[%s1533 + $0x70] sm:$0xff]
    %v1549 = vld [vmem:[%s1533 + $0x78] sm:$0xff]
    %v1550 = vld [vmem:[%s1533 + $0x80] sm:$0xff]
    %v1551 = vld [vmem:[%s1533 + $0x88] sm:$0xff]
    %v1552 = vld [vmem:[%s1533 + $0x90] sm:$0xff]
    %v1553 = vld [vmem:[%s1533 + $0x98] sm:$0xff]
    %v1554 = vld [vmem:[%s1533 + $0xa0] sm:$0xff]
    %v1555 = vld [vmem:[%s1533 + $0xa8] sm:$0xff]
    %v1556 = vld [vmem:[%s1533 + $0xb0] sm:$0xff]
    %v1557 = vld [vmem:[%s1533 + $0xb8] sm:$0xff]
    %v1558 = vld [vmem:[%s1533 + $0xc0] sm:$0xff]
    %v1559 = vld [vmem:[%s1533 + $0xc8] sm:$0xff]
    %v1560 = vld [vmem:[%s1533 + $0xd0] sm:$0xff]
    %v1561 = vld [vmem:[%s1533 + $0xd8] sm:$0xff]
    %v1562 = vld [vmem:[%s1533 + $0xe0] sm:$0xff]
    %v1563 = vld [vmem:[%s1533 + $0xe8] sm:$0xff]
    %v1564 = vld [vmem:[%s1533 + $0xf0] sm:$0xff]
    %v1565 = vld [vmem:[%s1533 + $0xf8] sm:$0xff]
    %v1566 = vld [vmem:[%s1533 + $0x100] sm:$0xff]
    %v1567 = vld [vmem:[%s1533 + $0x108] sm:$0xff]
    %v1568 = vld [vmem:[%s1533 + $0x110] sm:$0xff]
    %v1569 = vld [vmem:[%s1533 + $0x118] sm:$0xff]
    %v1570 = vld [vmem:[%s1533 + $0x120] sm:$0xff]
    %v1571 = vld [vmem:[%s1533 + $0x128] sm:$0xff]
    %v1572 = vld [vmem:[%s1533 + $0x130] sm:$0xff]
    %v1573 = vld [vmem:[%s1533 + $0x138] sm:$0xff]
    %v1574 = vld [vmem:[%s1533 + $0x140] sm:$0xff]
    %v1575 = vld [vmem:[%s1533 + $0x148] sm:$0xff]
    %v1576 = vld [vmem:[%s1533 + $0x150] sm:$0xff]
    %v1577 = vld [vmem:[%s1533 + $0x158] sm:$0xff]
    %v1578 = vld [vmem:[%s1533 + $0x160] sm:$0xff]
    %v1579 = vld [vmem:[%s1533 + $0x168] sm:$0xff]
    %v1580 = vld [vmem:[%s1533 + $0x170] sm:$0xff]
    %v1581 = vld [vmem:[%s1533 + $0x178] sm:$0xff]
    %v1582 = vld [vmem:[%s1533 + $0x180] sm:$0xff]
    %v1583 = vld [vmem:[%s1533 + $0x188] sm:$0xff]
    %v1584 = vld [vmem:[%s1533 + $0x190] sm:$0xff]
    %v1585 = vld [vmem:[%s1533 + $0x198] sm:$0xff]
    %v1586 = vld [vmem:[%s1533 + $0x1a0] sm:$0xff]
    %v1587 = vld [vmem:[%s1533 + $0x1a8] sm:$0xff]
    %v1588 = vld [vmem:[%s1533 + $0x1b0] sm:$0xff]
    %v1589 = vld [vmem:[%s1533 + $0x1b8] sm:$0xff]
    %v1590 = vld [vmem:[%s1533 + $0x1c0] sm:$0xff]
    %v1591 = vld [vmem:[%s1533 + $0x1c8] sm:$0xff]
    %v1592 = vld [vmem:[%s1533 + $0x1d0] sm:$0xff]
    %v1593 = vld [vmem:[%s1533 + $0x1d8] sm:$0xff]
    %v1594 = vld [vmem:[%s1533 + $0x1e0] sm:$0xff]
    %v1595 = vld [vmem:[%s1533 + $0x1e8] sm:$0xff]
    %v1596 = vld [vmem:[%s1533 + $0x1f0] sm:$0xff]
    %v1597 = vld [vmem:[%s1533 + $0x1f8] sm:$0xff]
    %v1598 = vmul.f32 %v1534, %v120
    %v1599 = vmul.f32 %v1535, %v121
    %v1600 = vmul.f32 %v1536, %v122
    %v1601 = vmul.f32 %v1537, %v123
    %v1602 = vmul.f32 %v1538, %v124
    %v1603 = vmul.f32 %v1539, %v125
    %v1604 = vmul.f32 %v1540, %v126
    %v1605 = vmul.f32 %v1541, %v127
    %v1606 = vmul.f32 %v1542, %v128
    %v1607 = vmul.f32 %v1543, %v129
    %v1608 = vmul.f32 %v1544, %v130
    %v1609 = vmul.f32 %v1545, %v131
    %v1610 = vmul.f32 %v1546, %v132
    %v1611 = vmul.f32 %v1547, %v133
    %v1612 = vmul.f32 %v1548, %v134
    %v1613 = vmul.f32 %v1549, %v135
    %v1614 = vmul.f32 %v1550, %v136
    %v1615 = vmul.f32 %v1551, %v137
    %v1616 = vmul.f32 %v1552, %v138
    %v1617 = vmul.f32 %v1553, %v139
    %v1618 = vmul.f32 %v1554, %v140
    %v1619 = vmul.f32 %v1555, %v141
    %v1620 = vmul.f32 %v1556, %v142
    %v1621 = vmul.f32 %v1557, %v143
    %v1622 = vmul.f32 %v1558, %v144
    %v1623 = vmul.f32 %v1559, %v145
    %v1624 = vmul.f32 %v1560, %v146
    %v1625 = vmul.f32 %v1561, %v147
    %v1626 = vmul.f32 %v1562, %v148
    %v1627 = vmul.f32 %v1563, %v149
    %v1628 = vmul.f32 %v1564, %v150
    %v1629 = vmul.f32 %v1565, %v151
    %v1630 = vmul.f32 %v1566, %v152
    %v1631 = vmul.f32 %v1567, %v153
    %v1632 = vmul.f32 %v1568, %v154
    %v1633 = vmul.f32 %v1569, %v155
    %v1634 = vmul.f32 %v1570, %v156
    %v1635 = vmul.f32 %v1571, %v157
    %v1636 = vmul.f32 %v1572, %v158
    %v1637 = vmul.f32 %v1573, %v159
    %v1638 = vmul.f32 %v1574, %v160
    %v1639 = vmul.f32 %v1575, %v161
    %v1640 = vmul.f32 %v1576, %v162
    %v1641 = vmul.f32 %v1577, %v163
    %v1642 = vmul.f32 %v1578, %v164
    %v1643 = vmul.f32 %v1579, %v165
    %v1644 = vmul.f32 %v1580, %v166
    %v1645 = vmul.f32 %v1581, %v167
    %v1646 = vmul.f32 %v1582, %v168
    %v1647 = vmul.f32 %v1583, %v169
    %v1648 = vmul.f32 %v1584, %v170
    %v1649 = vmul.f32 %v1585, %v171
    %v1650 = vmul.f32 %v1586, %v172
    %v1651 = vmul.f32 %v1587, %v173
    %v1652 = vmul.f32 %v1588, %v174
    %v1653 = vmul.f32 %v1589, %v175
    %v1654 = vmul.f32 %v1590, %v176
    %v1655 = vmul.f32 %v1591, %v177
    %v1656 = vmul.f32 %v1592, %v178
    %v1657 = vmul.f32 %v1593, %v179
    %v1658 = vmul.f32 %v1594, %v180
    %v1659 = vmul.f32 %v1595, %v181
    %v1660 = vmul.f32 %v1596, %v182
    %v1661 = vmul.f32 %v1597, %v183
    %v1662 = vadd.f32 %v1469, %v1598
    %v1663 = vadd.f32 %v1470, %v1599
    %v1664 = vadd.f32 %v1471, %v1600
    %v1665 = vadd.f32 %v1472, %v1601
    %v1666 = vadd.f32 %v1473, %v1602
    %v1667 = vadd.f32 %v1474, %v1603
    %v1668 = vadd.f32 %v1475, %v1604
    %v1669 = vadd.f32 %v1476, %v1605
    %v1670 = vadd.f32 %v1477, %v1606
    %v1671 = vadd.f32 %v1478, %v1607
    %v1672 = vadd.f32 %v1479, %v1608
    %v1673 = vadd.f32 %v1480, %v1609
    %v1674 = vadd.f32 %v1481, %v1610
    %v1675 = vadd.f32 %v1482, %v1611
    %v1676 = vadd.f32 %v1483, %v1612
    %v1677 = vadd.f32 %v1484, %v1613
    %v1678 = vadd.f32 %v1485, %v1614
    %v1679 = vadd.f32 %v1486, %v1615
    %v1680 = vadd.f32 %v1487, %v1616
    %v1681 = vadd.f32 %v1488, %v1617
    %v1682 = vadd.f32 %v1489, %v1618
    %v1683 = vadd.f32 %v1490, %v1619
    %v1684 = vadd.f32 %v1491, %v1620
    %v1685 = vadd.f32 %v1492, %v1621
    %v1686 = vadd.f32 %v1493, %v1622
    %v1687 = vadd.f32 %v1494, %v1623
    %v1688 = vadd.f32 %v1495, %v1624
    %v1689 = vadd.f32 %v1496, %v1625
    %v1690 = vadd.f32 %v1497, %v1626
    %v1691 = vadd.f32 %v1498, %v1627
    %v1692 = vadd.f32 %v1499, %v1628
    %v1693 = vadd.f32 %v1500, %v1629
    %v1694 = vadd.f32 %v1501, %v1630
    %v1695 = vadd.f32 %v1502, %v1631
    %v1696 = vadd.f32 %v1503, %v1632
    %v1697 = vadd.f32 %v1504, %v1633
    %v1698 = vadd.f32 %v1505, %v1634
    %v1699 = vadd.f32 %v1506, %v1635
    %v1700 = vadd.f32 %v1507, %v1636
    %v1701 = vadd.f32 %v1508, %v1637
    %v1702 = vadd.f32 %v1509, %v1638
    %v1703 = vadd.f32 %v1510, %v1639
    %v1704 = vadd.f32 %v1511, %v1640
    %v1705 = vadd.f32 %v1512, %v1641
    %v1706 = vadd.f32 %v1513, %v1642
    %v1707 = vadd.f32 %v1514, %v1643
    %v1708 = vadd.f32 %v1515, %v1644
    %v1709 = vadd.f32 %v1516, %v1645
    %v1710 = vadd.f32 %v1517, %v1646
    %v1711 = vadd.f32 %v1518, %v1647
    %v1712 = vadd.f32 %v1519, %v1648
    %v1713 = vadd.f32 %v1520, %v1649
    %v1714 = vadd.f32 %v1521, %v1650
    %v1715 = vadd.f32 %v1522, %v1651
    %v1716 = vadd.f32 %v1523, %v1652
    %v1717 = vadd.f32 %v1524, %v1653
    %v1718 = vadd.f32 %v1525, %v1654
    %v1719 = vadd.f32 %v1526, %v1655
    %v1720 = vadd.f32 %v1527, %v1656
    %v1721 = vadd.f32 %v1528, %v1657
    %v1722 = vadd.f32 %v1529, %v1658
    %v1723 = vadd.f32 %v1530, %v1659
    %v1724 = vadd.f32 %v1531, %v1660
    %v1725 = vadd.f32 %v1532, %v1661
    %s1726 = scalar_lea.vmem [#allocation7], 1536
    %v1727 = vld [vmem:[%s1726] sm:$0xff]
    %v1728 = vld [vmem:[%s1726 + $0x8] sm:$0xff]
    %v1729 = vld [vmem:[%s1726 + $0x10] sm:$0xff]
    %v1730 = vld [vmem:[%s1726 + $0x18] sm:$0xff]
    %v1731 = vld [vmem:[%s1726 + $0x20] sm:$0xff]
    %v1732 = vld [vmem:[%s1726 + $0x28] sm:$0xff]
    %v1733 = vld [vmem:[%s1726 + $0x30] sm:$0xff]
    %v1734 = vld [vmem:[%s1726 + $0x38] sm:$0xff]
    %v1735 = vld [vmem:[%s1726 + $0x40] sm:$0xff]
    %v1736 = vld [vmem:[%s1726 + $0x48] sm:$0xff]
    %v1737 = vld [vmem:[%s1726 + $0x50] sm:$0xff]
    %v1738 = vld [vmem:[%s1726 + $0x58] sm:$0xff]
    %v1739 = vld [vmem:[%s1726 + $0x60] sm:$0xff]
    %v1740 = vld [vmem:[%s1726 + $0x68] sm:$0xff]
    %v1741 = vld [vmem:[%s1726 + $0x70] sm:$0xff]
    %v1742 = vld [vmem:[%s1726 + $0x78] sm:$0xff]
    %v1743 = vld [vmem:[%s1726 + $0x80] sm:$0xff]
    %v1744 = vld [vmem:[%s1726 + $0x88] sm:$0xff]
    %v1745 = vld [vmem:[%s1726 + $0x90] sm:$0xff]
    %v1746 = vld [vmem:[%s1726 + $0x98] sm:$0xff]
    %v1747 = vld [vmem:[%s1726 + $0xa0] sm:$0xff]
    %v1748 = vld [vmem:[%s1726 + $0xa8] sm:$0xff]
    %v1749 = vld [vmem:[%s1726 + $0xb0] sm:$0xff]
    %v1750 = vld [vmem:[%s1726 + $0xb8] sm:$0xff]
    %v1751 = vld [vmem:[%s1726 + $0xc0] sm:$0xff]
    %v1752 = vld [vmem:[%s1726 + $0xc8] sm:$0xff]
    %v1753 = vld [vmem:[%s1726 + $0xd0] sm:$0xff]
    %v1754 = vld [vmem:[%s1726 + $0xd8] sm:$0xff]
    %v1755 = vld [vmem:[%s1726 + $0xe0] sm:$0xff]
    %v1756 = vld [vmem:[%s1726 + $0xe8] sm:$0xff]
    %v1757 = vld [vmem:[%s1726 + $0xf0] sm:$0xff]
    %v1758 = vld [vmem:[%s1726 + $0xf8] sm:$0xff]
    %v1759 = vld [vmem:[%s1726 + $0x100] sm:$0xff]
    %v1760 = vld [vmem:[%s1726 + $0x108] sm:$0xff]
    %v1761 = vld [vmem:[%s1726 + $0x110] sm:$0xff]
    %v1762 = vld [vmem:[%s1726 + $0x118] sm:$0xff]
    %v1763 = vld [vmem:[%s1726 + $0x120] sm:$0xff]
    %v1764 = vld [vmem:[%s1726 + $0x128] sm:$0xff]
    %v1765 = vld [vmem:[%s1726 + $0x130] sm:$0xff]
    %v1766 = vld [vmem:[%s1726 + $0x138] sm:$0xff]
    %v1767 = vld [vmem:[%s1726 + $0x140] sm:$0xff]
    %v1768 = vld [vmem:[%s1726 + $0x148] sm:$0xff]
    %v1769 = vld [vmem:[%s1726 + $0x150] sm:$0xff]
    %v1770 = vld [vmem:[%s1726 + $0x158] sm:$0xff]
    %v1771 = vld [vmem:[%s1726 + $0x160] sm:$0xff]
    %v1772 = vld [vmem:[%s1726 + $0x168] sm:$0xff]
    %v1773 = vld [vmem:[%s1726 + $0x170] sm:$0xff]
    %v1774 = vld [vmem:[%s1726 + $0x178] sm:$0xff]
    %v1775 = vld [vmem:[%s1726 + $0x180] sm:$0xff]
    %v1776 = vld [vmem:[%s1726 + $0x188] sm:$0xff]
    %v1777 = vld [vmem:[%s1726 + $0x190] sm:$0xff]
    %v1778 = vld [vmem:[%s1726 + $0x198] sm:$0xff]
    %v1779 = vld [vmem:[%s1726 + $0x1a0] sm:$0xff]
    %v1780 = vld [vmem:[%s1726 + $0x1a8] sm:$0xff]
    %v1781 = vld [vmem:[%s1726 + $0x1b0] sm:$0xff]
    %v1782 = vld [vmem:[%s1726 + $0x1b8] sm:$0xff]
    %v1783 = vld [vmem:[%s1726 + $0x1c0] sm:$0xff]
    %v1784 = vld [vmem:[%s1726 + $0x1c8] sm:$0xff]
    %v1785 = vld [vmem:[%s1726 + $0x1d0] sm:$0xff]
    %v1786 = vld [vmem:[%s1726 + $0x1d8] sm:$0xff]
    %v1787 = vld [vmem:[%s1726 + $0x1e0] sm:$0xff]
    %v1788 = vld [vmem:[%s1726 + $0x1e8] sm:$0xff]
    %v1789 = vld [vmem:[%s1726 + $0x1f0] sm:$0xff]
    %v1790 = vld [vmem:[%s1726 + $0x1f8] sm:$0xff]
    %v1791 = vmul.f32 %v1727, %v184
    %v1792 = vmul.f32 %v1728, %v185
    %v1793 = vmul.f32 %v1729, %v186
    %v1794 = vmul.f32 %v1730, %v187
    %v1795 = vmul.f32 %v1731, %v188
    %v1796 = vmul.f32 %v1732, %v189
    %v1797 = vmul.f32 %v1733, %v190
    %v1798 = vmul.f32 %v1734, %v191
    %v1799 = vmul.f32 %v1735, %v192
    %v1800 = vmul.f32 %v1736, %v193
    %v1801 = vmul.f32 %v1737, %v194
    %v1802 = vmul.f32 %v1738, %v195
    %v1803 = vmul.f32 %v1739, %v196
    %v1804 = vmul.f32 %v1740, %v197
    %v1805 = vmul.f32 %v1741, %v198
    %v1806 = vmul.f32 %v1742, %v199
    %v1807 = vmul.f32 %v1743, %v200
    %v1808 = vmul.f32 %v1744, %v201
    %v1809 = vmul.f32 %v1745, %v202
    %v1810 = vmul.f32 %v1746, %v203
    %v1811 = vmul.f32 %v1747, %v204
    %v1812 = vmul.f32 %v1748, %v205
    %v1813 = vmul.f32 %v1749, %v206
    %v1814 = vmul.f32 %v1750, %v207
    %v1815 = vmul.f32 %v1751, %v208
    %v1816 = vmul.f32 %v1752, %v209
    %v1817 = vmul.f32 %v1753, %v210
    %v1818 = vmul.f32 %v1754, %v211
    %v1819 = vmul.f32 %v1755, %v212
    %v1820 = vmul.f32 %v1756, %v213
    %v1821 = vmul.f32 %v1757, %v214
    %v1822 = vmul.f32 %v1758, %v215
    %v1823 = vmul.f32 %v1759, %v216
    %v1824 = vmul.f32 %v1760, %v217
    %v1825 = vmul.f32 %v1761, %v218
    %v1826 = vmul.f32 %v1762, %v219
    %v1827 = vmul.f32 %v1763, %v220
    %v1828 = vmul.f32 %v1764, %v221
    %v1829 = vmul.f32 %v1765, %v222
    %v1830 = vmul.f32 %v1766, %v223
    %v1831 = vmul.f32 %v1767, %v224
    %v1832 = vmul.f32 %v1768, %v225
    %v1833 = vmul.f32 %v1769, %v226
    %v1834 = vmul.f32 %v1770, %v227
    %v1835 = vmul.f32 %v1771, %v228
    %v1836 = vmul.f32 %v1772, %v229
    %v1837 = vmul.f32 %v1773, %v230
    %v1838 = vmul.f32 %v1774, %v231
    %v1839 = vmul.f32 %v1775, %v232
    %v1840 = vmul.f32 %v1776, %v233
    %v1841 = vmul.f32 %v1777, %v234
    %v1842 = vmul.f32 %v1778, %v235
    %v1843 = vmul.f32 %v1779, %v236
    %v1844 = vmul.f32 %v1780, %v237
    %v1845 = vmul.f32 %v1781, %v238
    %v1846 = vmul.f32 %v1782, %v239
    %v1847 = vmul.f32 %v1783, %v240
    %v1848 = vmul.f32 %v1784, %v241
    %v1849 = vmul.f32 %v1785, %v242
    %v1850 = vmul.f32 %v1786, %v243
    %v1851 = vmul.f32 %v1787, %v244
    %v1852 = vmul.f32 %v1788, %v245
    %v1853 = vmul.f32 %v1789, %v246
    %v1854 = vmul.f32 %v1790, %v247
    %v1855 = vadd.f32 %v1662, %v1791
    %v1856 = vadd.f32 %v1663, %v1792
    %v1857 = vadd.f32 %v1664, %v1793
    %v1858 = vadd.f32 %v1665, %v1794
    %v1859 = vadd.f32 %v1666, %v1795
    %v1860 = vadd.f32 %v1667, %v1796
    %v1861 = vadd.f32 %v1668, %v1797
    %v1862 = vadd.f32 %v1669, %v1798
    %v1863 = vadd.f32 %v1670, %v1799
    %v1864 = vadd.f32 %v1671, %v1800
    %v1865 = vadd.f32 %v1672, %v1801
    %v1866 = vadd.f32 %v1673, %v1802
    %v1867 = vadd.f32 %v1674, %v1803
    %v1868 = vadd.f32 %v1675, %v1804
    %v1869 = vadd.f32 %v1676, %v1805
    %v1870 = vadd.f32 %v1677, %v1806
    %v1871 = vadd.f32 %v1678, %v1807
    %v1872 = vadd.f32 %v1679, %v1808
    %v1873 = vadd.f32 %v1680, %v1809
    %v1874 = vadd.f32 %v1681, %v1810
    %v1875 = vadd.f32 %v1682, %v1811
    %v1876 = vadd.f32 %v1683, %v1812
    %v1877 = vadd.f32 %v1684, %v1813
    %v1878 = vadd.f32 %v1685, %v1814
    %v1879 = vadd.f32 %v1686, %v1815
    %v1880 = vadd.f32 %v1687, %v1816
    %v1881 = vadd.f32 %v1688, %v1817
    %v1882 = vadd.f32 %v1689, %v1818
    %v1883 = vadd.f32 %v1690, %v1819
    %v1884 = vadd.f32 %v1691, %v1820
    %v1885 = vadd.f32 %v1692, %v1821
    %v1886 = vadd.f32 %v1693, %v1822
    %v1887 = vadd.f32 %v1694, %v1823
    %v1888 = vadd.f32 %v1695, %v1824
    %v1889 = vadd.f32 %v1696, %v1825
    %v1890 = vadd.f32 %v1697, %v1826
    %v1891 = vadd.f32 %v1698, %v1827
    %v1892 = vadd.f32 %v1699, %v1828
    %v1893 = vadd.f32 %v1700, %v1829
    %v1894 = vadd.f32 %v1701, %v1830
    %v1895 = vadd.f32 %v1702, %v1831
    %v1896 = vadd.f32 %v1703, %v1832
    %v1897 = vadd.f32 %v1704, %v1833
    %v1898 = vadd.f32 %v1705, %v1834
    %v1899 = vadd.f32 %v1706, %v1835
    %v1900 = vadd.f32 %v1707, %v1836
    %v1901 = vadd.f32 %v1708, %v1837
    %v1902 = vadd.f32 %v1709, %v1838
    %v1903 = vadd.f32 %v1710, %v1839
    %v1904 = vadd.f32 %v1711, %v1840
    %v1905 = vadd.f32 %v1712, %v1841
    %v1906 = vadd.f32 %v1713, %v1842
    %v1907 = vadd.f32 %v1714, %v1843
    %v1908 = vadd.f32 %v1715, %v1844
    %v1909 = vadd.f32 %v1716, %v1845
    %v1910 = vadd.f32 %v1717, %v1846
    %v1911 = vadd.f32 %v1718, %v1847
    %v1912 = vadd.f32 %v1719, %v1848
    %v1913 = vadd.f32 %v1720, %v1849
    %v1914 = vadd.f32 %v1721, %v1850
    %v1915 = vadd.f32 %v1722, %v1851
    %v1916 = vadd.f32 %v1723, %v1852
    %v1917 = vadd.f32 %v1724, %v1853
    %v1918 = vadd.f32 %v1725, %v1854
    %s1919 = scalar_lea.vmem [#allocation7], 2048
    %v1920 = vld [vmem:[%s1919] sm:$0xff]
    %v1921 = vld [vmem:[%s1919 + $0x8] sm:$0xff]
    %v1922 = vld [vmem:[%s1919 + $0x10] sm:$0xff]
    %v1923 = vld [vmem:[%s1919 + $0x18] sm:$0xff]
    %v1924 = vld [vmem:[%s1919 + $0x20] sm:$0xff]
    %v1925 = vld [vmem:[%s1919 + $0x28] sm:$0xff]
    %v1926 = vld [vmem:[%s1919 + $0x30] sm:$0xff]
    %v1927 = vld [vmem:[%s1919 + $0x38] sm:$0xff]
    %v1928 = vld [vmem:[%s1919 + $0x40] sm:$0xff]
    %v1929 = vld [vmem:[%s1919 + $0x48] sm:$0xff]
    %v1930 = vld [vmem:[%s1919 + $0x50] sm:$0xff]
    %v1931 = vld [vmem:[%s1919 + $0x58] sm:$0xff]
    %v1932 = vld [vmem:[%s1919 + $0x60] sm:$0xff]
    %v1933 = vld [vmem:[%s1919 + $0x68] sm:$0xff]
    %v1934 = vld [vmem:[%s1919 + $0x70] sm:$0xff]
    %v1935 = vld [vmem:[%s1919 + $0x78] sm:$0xff]
    %v1936 = vld [vmem:[%s1919 + $0x80] sm:$0xff]
    %v1937 = vld [vmem:[%s1919 + $0x88] sm:$0xff]
    %v1938 = vld [vmem:[%s1919 + $0x90] sm:$0xff]
    %v1939 = vld [vmem:[%s1919 + $0x98] sm:$0xff]
    %v1940 = vld [vmem:[%s1919 + $0xa0] sm:$0xff]
    %v1941 = vld [vmem:[%s1919 + $0xa8] sm:$0xff]
    %v1942 = vld [vmem:[%s1919 + $0xb0] sm:$0xff]
    %v1943 = vld [vmem:[%s1919 + $0xb8] sm:$0xff]
    %v1944 = vld [vmem:[%s1919 + $0xc0] sm:$0xff]
    %v1945 = vld [vmem:[%s1919 + $0xc8] sm:$0xff]
    %v1946 = vld [vmem:[%s1919 + $0xd0] sm:$0xff]
    %v1947 = vld [vmem:[%s1919 + $0xd8] sm:$0xff]
    %v1948 = vld [vmem:[%s1919 + $0xe0] sm:$0xff]
    %v1949 = vld [vmem:[%s1919 + $0xe8] sm:$0xff]
    %v1950 = vld [vmem:[%s1919 + $0xf0] sm:$0xff]
    %v1951 = vld [vmem:[%s1919 + $0xf8] sm:$0xff]
    %v1952 = vld [vmem:[%s1919 + $0x100] sm:$0xff]
    %v1953 = vld [vmem:[%s1919 + $0x108] sm:$0xff]
    %v1954 = vld [vmem:[%s1919 + $0x110] sm:$0xff]
    %v1955 = vld [vmem:[%s1919 + $0x118] sm:$0xff]
    %v1956 = vld [vmem:[%s1919 + $0x120] sm:$0xff]
    %v1957 = vld [vmem:[%s1919 + $0x128] sm:$0xff]
    %v1958 = vld [vmem:[%s1919 + $0x130] sm:$0xff]
    %v1959 = vld [vmem:[%s1919 + $0x138] sm:$0xff]
    %v1960 = vld [vmem:[%s1919 + $0x140] sm:$0xff]
    %v1961 = vld [vmem:[%s1919 + $0x148] sm:$0xff]
    %v1962 = vld [vmem:[%s1919 + $0x150] sm:$0xff]
    %v1963 = vld [vmem:[%s1919 + $0x158] sm:$0xff]
    %v1964 = vld [vmem:[%s1919 + $0x160] sm:$0xff]
    %v1965 = vld [vmem:[%s1919 + $0x168] sm:$0xff]
    %v1966 = vld [vmem:[%s1919 + $0x170] sm:$0xff]
    %v1967 = vld [vmem:[%s1919 + $0x178] sm:$0xff]
    %v1968 = vld [vmem:[%s1919 + $0x180] sm:$0xff]
    %v1969 = vld [vmem:[%s1919 + $0x188] sm:$0xff]
    %v1970 = vld [vmem:[%s1919 + $0x190] sm:$0xff]
    %v1971 = vld [vmem:[%s1919 + $0x198] sm:$0xff]
    %v1972 = vld [vmem:[%s1919 + $0x1a0] sm:$0xff]
    %v1973 = vld [vmem:[%s1919 + $0x1a8] sm:$0xff]
    %v1974 = vld [vmem:[%s1919 + $0x1b0] sm:$0xff]
    %v1975 = vld [vmem:[%s1919 + $0x1b8] sm:$0xff]
    %v1976 = vld [vmem:[%s1919 + $0x1c0] sm:$0xff]
    %v1977 = vld [vmem:[%s1919 + $0x1c8] sm:$0xff]
    %v1978 = vld [vmem:[%s1919 + $0x1d0] sm:$0xff]
    %v1979 = vld [vmem:[%s1919 + $0x1d8] sm:$0xff]
    %v1980 = vld [vmem:[%s1919 + $0x1e0] sm:$0xff]
    %v1981 = vld [vmem:[%s1919 + $0x1e8] sm:$0xff]
    %v1982 = vld [vmem:[%s1919 + $0x1f0] sm:$0xff]
    %v1983 = vld [vmem:[%s1919 + $0x1f8] sm:$0xff]
    %v1984 = vmul.f32 %v1920, %v1149
    %v1985 = vmul.f32 %v1921, %v1151
    %v1986 = vmul.f32 %v1922, %v1153
    %v1987 = vmul.f32 %v1923, %v1155
    %v1988 = vmul.f32 %v1924, %v1157
    %v1989 = vmul.f32 %v1925, %v1159
    %v1990 = vmul.f32 %v1926, %v1161
    %v1991 = vmul.f32 %v1927, %v1163
    %v1992 = vmul.f32 %v1928, %v1165
    %v1993 = vmul.f32 %v1929, %v1167
    %v1994 = vmul.f32 %v1930, %v1169
    %v1995 = vmul.f32 %v1931, %v1171
    %v1996 = vmul.f32 %v1932, %v1173
    %v1997 = vmul.f32 %v1933, %v1175
    %v1998 = vmul.f32 %v1934, %v1177
    %v1999 = vmul.f32 %v1935, %v1179
    %v2000 = vmul.f32 %v1936, %v1181
    %v2001 = vmul.f32 %v1937, %v1183
    %v2002 = vmul.f32 %v1938, %v1185
    %v2003 = vmul.f32 %v1939, %v1187
    %v2004 = vmul.f32 %v1940, %v1189
    %v2005 = vmul.f32 %v1941, %v1191
    %v2006 = vmul.f32 %v1942, %v1193
    %v2007 = vmul.f32 %v1943, %v1195
    %v2008 = vmul.f32 %v1944, %v1197
    %v2009 = vmul.f32 %v1945, %v1199
    %v2010 = vmul.f32 %v1946, %v1201
    %v2011 = vmul.f32 %v1947, %v1203
    %v2012 = vmul.f32 %v1948, %v1205
    %v2013 = vmul.f32 %v1949, %v1207
    %v2014 = vmul.f32 %v1950, %v1209
    %v2015 = vmul.f32 %v1951, %v1211
    %v2016 = vmul.f32 %v1952, %v1213
    %v2017 = vmul.f32 %v1953, %v1215
    %v2018 = vmul.f32 %v1954, %v1217
    %v2019 = vmul.f32 %v1955, %v1219
    %v2020 = vmul.f32 %v1956, %v1221
    %v2021 = vmul.f32 %v1957, %v1223
    %v2022 = vmul.f32 %v1958, %v1225
    %v2023 = vmul.f32 %v1959, %v1227
    %v2024 = vmul.f32 %v1960, %v1229
    %v2025 = vmul.f32 %v1961, %v1231
    %v2026 = vmul.f32 %v1962, %v1233
    %v2027 = vmul.f32 %v1963, %v1235
    %v2028 = vmul.f32 %v1964, %v1237
    %v2029 = vmul.f32 %v1965, %v1239
    %v2030 = vmul.f32 %v1966, %v1241
    %v2031 = vmul.f32 %v1967, %v1243
    %v2032 = vmul.f32 %v1968, %v1245
    %v2033 = vmul.f32 %v1969, %v1247
    %v2034 = vmul.f32 %v1970, %v1249
    %v2035 = vmul.f32 %v1971, %v1251
    %v2036 = vmul.f32 %v1972, %v1253
    %v2037 = vmul.f32 %v1973, %v1255
    %v2038 = vmul.f32 %v1974, %v1257
    %v2039 = vmul.f32 %v1975, %v1259
    %v2040 = vmul.f32 %v1976, %v1261
    %v2041 = vmul.f32 %v1977, %v1263
    %v2042 = vmul.f32 %v1978, %v1265
    %v2043 = vmul.f32 %v1979, %v1267
    %v2044 = vmul.f32 %v1980, %v1269
    %v2045 = vmul.f32 %v1981, %v1271
    %v2046 = vmul.f32 %v1982, %v1273
    %v2047 = vmul.f32 %v1983, %v1275
    %v2048 = vadd.f32 %v1855, %v1984
    %v2049 = vadd.f32 %v1856, %v1985
    %v2050 = vadd.f32 %v1857, %v1986
    %v2051 = vadd.f32 %v1858, %v1987
    %v2052 = vadd.f32 %v1859, %v1988
    %v2053 = vadd.f32 %v1860, %v1989
    %v2054 = vadd.f32 %v1861, %v1990
    %v2055 = vadd.f32 %v1862, %v1991
    %v2056 = vadd.f32 %v1863, %v1992
    %v2057 = vadd.f32 %v1864, %v1993
    %v2058 = vadd.f32 %v1865, %v1994
    %v2059 = vadd.f32 %v1866, %v1995
    %v2060 = vadd.f32 %v1867, %v1996
    %v2061 = vadd.f32 %v1868, %v1997
    %v2062 = vadd.f32 %v1869, %v1998
    %v2063 = vadd.f32 %v1870, %v1999
    %v2064 = vadd.f32 %v1871, %v2000
    %v2065 = vadd.f32 %v1872, %v2001
    %v2066 = vadd.f32 %v1873, %v2002
    %v2067 = vadd.f32 %v1874, %v2003
    %v2068 = vadd.f32 %v1875, %v2004
    %v2069 = vadd.f32 %v1876, %v2005
    %v2070 = vadd.f32 %v1877, %v2006
    %v2071 = vadd.f32 %v1878, %v2007
    %v2072 = vadd.f32 %v1879, %v2008
    %v2073 = vadd.f32 %v1880, %v2009
    %v2074 = vadd.f32 %v1881, %v2010
    %v2075 = vadd.f32 %v1882, %v2011
    %v2076 = vadd.f32 %v1883, %v2012
    %v2077 = vadd.f32 %v1884, %v2013
    %v2078 = vadd.f32 %v1885, %v2014
    %v2079 = vadd.f32 %v1886, %v2015
    %v2080 = vadd.f32 %v1887, %v2016
    %v2081 = vadd.f32 %v1888, %v2017
    %v2082 = vadd.f32 %v1889, %v2018
    %v2083 = vadd.f32 %v1890, %v2019
    %v2084 = vadd.f32 %v1891, %v2020
    %v2085 = vadd.f32 %v1892, %v2021
    %v2086 = vadd.f32 %v1893, %v2022
    %v2087 = vadd.f32 %v1894, %v2023
    %v2088 = vadd.f32 %v1895, %v2024
    %v2089 = vadd.f32 %v1896, %v2025
    %v2090 = vadd.f32 %v1897, %v2026
    %v2091 = vadd.f32 %v1898, %v2027
    %v2092 = vadd.f32 %v1899, %v2028
    %v2093 = vadd.f32 %v1900, %v2029
    %v2094 = vadd.f32 %v1901, %v2030
    %v2095 = vadd.f32 %v1902, %v2031
    %v2096 = vadd.f32 %v1903, %v2032
    %v2097 = vadd.f32 %v1904, %v2033
    %v2098 = vadd.f32 %v1905, %v2034
    %v2099 = vadd.f32 %v1906, %v2035
    %v2100 = vadd.f32 %v1907, %v2036
    %v2101 = vadd.f32 %v1908, %v2037
    %v2102 = vadd.f32 %v1909, %v2038
    %v2103 = vadd.f32 %v1910, %v2039
    %v2104 = vadd.f32 %v1911, %v2040
    %v2105 = vadd.f32 %v1912, %v2041
    %v2106 = vadd.f32 %v1913, %v2042
    %v2107 = vadd.f32 %v1914, %v2043
    %v2108 = vadd.f32 %v1915, %v2044
    %v2109 = vadd.f32 %v1916, %v2045
    %v2110 = vadd.f32 %v1917, %v2046
    %v2111 = vadd.f32 %v1918, %v2047
    %2112 = vst [vmem:[#allocation8] sm:$0xff] %v2048
    %2113 = vst [vmem:[#allocation8 + $0x8] sm:$0xff] %v2049
    %2114 = vst [vmem:[#allocation8 + $0x10] sm:$0xff] %v2050
    %2115 = vst [vmem:[#allocation8 + $0x18] sm:$0xff] %v2051
    %2116 = vst [vmem:[#allocation8 + $0x20] sm:$0xff] %v2052
    %2117 = vst [vmem:[#allocation8 + $0x28] sm:$0xff] %v2053
    %2118 = vst [vmem:[#allocation8 + $0x30] sm:$0xff] %v2054
    %2119 = vst [vmem:[#allocation8 + $0x38] sm:$0xff] %v2055
    %2120 = vst [vmem:[#allocation8 + $0x40] sm:$0xff] %v2056
    %2121 = vst [vmem:[#allocation8 + $0x48] sm:$0xff] %v2057
    %2122 = vst [vmem:[#allocation8 + $0x50] sm:$0xff] %v2058
    %2123 = vst [vmem:[#allocation8 + $0x58] sm:$0xff] %v2059
    %2124 = vst [vmem:[#allocation8 + $0x60] sm:$0xff] %v2060
    %2125 = vst [vmem:[#allocation8 + $0x68] sm:$0xff] %v2061
    %2126 = vst [vmem:[#allocation8 + $0x70] sm:$0xff] %v2062
    %2127 = vst [vmem:[#allocation8 + $0x78] sm:$0xff] %v2063
    %2128 = vst [vmem:[#allocation8 + $0x80] sm:$0xff] %v2064
    %2129 = vst [vmem:[#allocation8 + $0x88] sm:$0xff] %v2065
    %2130 = vst [vmem:[#allocation8 + $0x90] sm:$0xff] %v2066
    %2131 = vst [vmem:[#allocation8 + $0x98] sm:$0xff] %v2067
    %2132 = vst [vmem:[#allocation8 + $0xa0] sm:$0xff] %v2068
    %2133 = vst [vmem:[#allocation8 + $0xa8] sm:$0xff] %v2069
    %2134 = vst [vmem:[#allocation8 + $0xb0] sm:$0xff] %v2070
    %2135 = vst [vmem:[#allocation8 + $0xb8] sm:$0xff] %v2071
    %2136 = vst [vmem:[#allocation8 + $0xc0] sm:$0xff] %v2072
    %2137 = vst [vmem:[#allocation8 + $0xc8] sm:$0xff] %v2073
    %2138 = vst [vmem:[#allocation8 + $0xd0] sm:$0xff] %v2074
    %2139 = vst [vmem:[#allocation8 + $0xd8] sm:$0xff] %v2075
    %2140 = vst [vmem:[#allocation8 + $0xe0] sm:$0xff] %v2076
    %2141 = vst [vmem:[#allocation8 + $0xe8] sm:$0xff] %v2077
    %2142 = vst [vmem:[#allocation8 + $0xf0] sm:$0xff] %v2078
    %2143 = vst [vmem:[#allocation8 + $0xf8] sm:$0xff] %v2079
    %2144 = vst [vmem:[#allocation8 + $0x100] sm:$0xff] %v2080
    %2145 = vst [vmem:[#allocation8 + $0x108] sm:$0xff] %v2081
    %2146 = vst [vmem:[#allocation8 + $0x110] sm:$0xff] %v2082
    %2147 = vst [vmem:[#allocation8 + $0x118] sm:$0xff] %v2083
    %2148 = vst [vmem:[#allocation8 + $0x120] sm:$0xff] %v2084
    %2149 = vst [vmem:[#allocation8 + $0x128] sm:$0xff] %v2085
    %2150 = vst [vmem:[#allocation8 + $0x130] sm:$0xff] %v2086
    %2151 = vst [vmem:[#allocation8 + $0x138] sm:$0xff] %v2087
    %2152 = vst [vmem:[#allocation8 + $0x140] sm:$0xff] %v2088
    %2153 = vst [vmem:[#allocation8 + $0x148] sm:$0xff] %v2089
    %2154 = vst [vmem:[#allocation8 + $0x150] sm:$0xff] %v2090
    %2155 = vst [vmem:[#allocation8 + $0x158] sm:$0xff] %v2091
    %2156 = vst [vmem:[#allocation8 + $0x160] sm:$0xff] %v2092
    %2157 = vst [vmem:[#allocation8 + $0x168] sm:$0xff] %v2093
    %2158 = vst [vmem:[#allocation8 + $0x170] sm:$0xff] %v2094
    %2159 = vst [vmem:[#allocation8 + $0x178] sm:$0xff] %v2095
    %2160 = vst [vmem:[#allocation8 + $0x180] sm:$0xff] %v2096
    %2161 = vst [vmem:[#allocation8 + $0x188] sm:$0xff] %v2097
    %2162 = vst [vmem:[#allocation8 + $0x190] sm:$0xff] %v2098
    %2163 = vst [vmem:[#allocation8 + $0x198] sm:$0xff] %v2099
    %2164 = vst [vmem:[#allocation8 + $0x1a0] sm:$0xff] %v2100
    %2165 = vst [vmem:[#allocation8 + $0x1a8] sm:$0xff] %v2101
    %2166 = vst [vmem:[#allocation8 + $0x1b0] sm:$0xff] %v2102
    %2167 = vst [vmem:[#allocation8 + $0x1b8] sm:$0xff] %v2103
    %2168 = vst [vmem:[#allocation8 + $0x1c0] sm:$0xff] %v2104
    %2169 = vst [vmem:[#allocation8 + $0x1c8] sm:$0xff] %v2105
    %2170 = vst [vmem:[#allocation8 + $0x1d0] sm:$0xff] %v2106
    %2171 = vst [vmem:[#allocation8 + $0x1d8] sm:$0xff] %v2107
    %2172 = vst [vmem:[#allocation8 + $0x1e0] sm:$0xff] %v2108
    %2173 = vst [vmem:[#allocation8 + $0x1e8] sm:$0xff] %v2109
    %2174 = vst [vmem:[#allocation8 + $0x1f0] sm:$0xff] %v2110
    %2175 = vst [vmem:[#allocation8 + $0x1f8] sm:$0xff] %v2111
    // Predicated region
    $region26: #{tpu_custom_call.1} parent=1 // pred_check
      _
    $region27: #{tpu_custom_call.1} parent=1 // pred_check_branch
      %2177 = sbr.rel (0) target = $region29
    $region28: #{tpu_custom_call.1} parent=1 // pred_region
      %s2179 = ssub.s32 8192, 8192
      %2180 = vsyncadd [#allocation4], %s2179
      %s2181 = sshll.u32 [#allocation8], 4
      %s2182 = int_to_ptr.vmem [resolvable:$true] %s2181
      %2187 = dma.vmem_to_hbm [thread:$0]  %s2182, 8192, %s3, [#allocation4], 512, 512, 32
    $region29: #{tpu_custom_call.1} parent=1 // pred_fallthru
      _
    // Predicated region
    $region30: #{tpu_custom_call.1} parent=1 // pred_check
      _
    $region31: #{tpu_custom_call.1} parent=1 // pred_check_branch
      %2189 = sbr.rel (0) target = $region33
    $region32: #{tpu_custom_call.1} parent=1 // pred_region
      %2190 = dma.done [#allocation4], 8192
    $region33: #{tpu_custom_call.1} parent=1 // pred_fallthru
      _
    %2191 = vsyncpa [#allocation3], 1
    %2192 = vsyncpa [#allocation6], 1
    %2193 = vsyncpa [#allocation4], 1

</llo_original>
